<compile_context>
chip_gen: v6e
topology: v6e:2x2x1
jax: 0.10.0
libtpu: 0.0.40
codegen_flags: <defaults>
</compile_context>

<pallas_src>
import functools

import jax
import jax.numpy as jnp
from jax.experimental import pallas as pl
from jax.experimental.pallas import tpu as pltpu


# ----------------------------------------------------------------------------
# Small helpers
# ----------------------------------------------------------------------------

def _round_up(v, m):
    return ((v + m - 1) // m) * m


def _bn_fold(bn, eps=1e-5):
    gamma, beta, mean, var = bn
    scale = gamma / jnp.sqrt(var + eps)
    bias = beta - mean * scale
    return scale.reshape(1, -1), bias.reshape(1, -1)


def _fold_conv(w, bn):
    """(Cout,Cin,kh,kw) conv + BN -> ((kh*kw*Cin, Cout) bf16, (1, Cout) f32)."""
    cout, cin, kh, kw = w.shape
    scale, bias = _bn_fold(bn)
    wm = jnp.transpose(w, (2, 3, 1, 0)).reshape(kh * kw * cin, cout) * scale
    return wm.astype(jnp.bfloat16), bias


def _pad_cout(w, bn, cto):
    """Zero-pad conv output channels to `cto`; padded BN channels get scale=1,
    bias=0 so the extra channels stay exactly zero after ReLU."""
    cout = w.shape[0]
    if cout >= cto:
        return w, bn
    pad = cto - cout
    w = jnp.pad(w, ((0, pad),) + ((0, 0),) * (w.ndim - 1))
    gamma, beta, mean, var = bn
    gamma = jnp.pad(gamma, (0, pad), constant_values=1.0)
    beta = jnp.pad(beta, (0, pad))
    mean = jnp.pad(mean, (0, pad))
    var = jnp.pad(var, (0, pad), constant_values=1.0)
    return w, (gamma, beta, mean, var)


def _pad_cin(w, cto):
    cin = w.shape[1]
    if cin >= cto:
        return w
    return jnp.pad(w, ((0, 0), (0, cto - cin)) + ((0, 0),) * (w.ndim - 2))


# ----------------------------------------------------------------------------
# Pallas kernels
# ----------------------------------------------------------------------------

def _matmul_bias_act_kernel(a_ref, w_ref, *rest, relu, has_scale):
    """o = act((A @ W) * col_scale? + bias).  W may be int8 (weight-only)."""
    if has_scale:
        scale_ref, bias_ref, o_ref = rest
    else:
        bias_ref, o_ref = rest
    w = w_ref[...]
    if w_ref.dtype == jnp.int8:
        # Weight-only int8: dequant on the fly (these matmuls are HBM-bound).
        w = w.astype(jnp.float32).astype(jnp.bfloat16)
    y = jnp.dot(a_ref[...], w, preferred_element_type=jnp.float32)
    if has_scale:
        y = y * scale_ref[...]
    y = y + bias_ref[...]
    if relu:
        y = jnp.maximum(y, 0.0)
    o_ref[...] = y.astype(o_ref.dtype)


def _conv3x3_s1_kernel(x_ref, w_ref, bias_ref, *rest, tap_offsets, m, relu,
                       has_residual):
    """Fused stride-1 3x3 conv + BN bias (+residual) (+ReLU), all images
    batched into one grid step.

    x_ref:    (N, Lp, Cin)   bf16  zero-padded images, rows flattened
    w_ref:    (9*Cin, tn)    bf16  BN scale already folded in
    bias_ref: (1, tn)        f32
    r_ref:    (N*m, tn)      bf16  optional residual
    o_ref:    (N*m, tn)      bf16

    The 9 taps are static shifted slices of the flattened images; they are
    K-concatenated into an in-VMEM im2col slab so the whole conv is a single
    (N*m, 9*Cin) @ (9*Cin, tn) MXU matmul.
    """
    if has_residual:
        r_ref, o_ref = rest
    else:
        (o_ref,) = rest
    n, _, cin = x_ref.shape
    cols = [x_ref[:, off:off + m, :].reshape(n * m, cin) for off in tap_offsets]
    slab = jnp.concatenate(cols, axis=-1)                   # (N*m, 9*Cin)
    y = jnp.dot(slab, w_ref[...], preferred_element_type=jnp.float32)
    y = y + bias_ref[...]
    if has_residual:
        y = y + r_ref[...].astype(jnp.float32)
    if relu:
        y = jnp.maximum(y, 0.0)
    o_ref[...] = y.astype(o_ref.dtype)


def _maxpool3x3_kernel(x_ref, o_ref, *, tap_offsets, m):
    """Stride-1 3x3 window max over padded, row-flattened images (all N)."""
    acc = None
    for off in tap_offsets:
        a = x_ref[:, off:off + m, :]
        acc = a if acc is None else jnp.maximum(acc, a)
    o_ref[...] = acc


def _mil_pool_kernel(x_ref, avg_ref, max_ref, sum_sc, max_sc, *, inv_l):
    """Adaptive avg+max pooling over the (patches*h*w) axis, tiled over L."""
    li = pl.program_id(1)

    @pl.when(li == 0)
    def _():
        sum_sc[...] = jnp.zeros_like(sum_sc)
        max_sc[...] = jnp.full_like(max_sc, -jnp.inf)

    x = x_ref[0].astype(jnp.float32)
    sum_sc[...] = sum_sc[...] + jnp.sum(x, axis=0, keepdims=True)
    max_sc[...] = jnp.maximum(max_sc[...], jnp.max(x, axis=0, keepdims=True))

    @pl.when(li == pl.num_programs(1) - 1)
    def _():
        avg_ref[0] = sum_sc[...] * inv_l
        max_ref[0] = max_sc[...]


# ----------------------------------------------------------------------------
# Pallas wrappers
# ----------------------------------------------------------------------------

def pallas_matmul_bias(a, w, bias, *, scale=None, relu=False,
                       out_dtype=jnp.bfloat16):
    """a:(M,K), w:(K,N) bf16|int8, bias:(1,N) f32, scale:(1,N) f32 optional."""
    m, k = a.shape
    n = w.shape[1]
    a = a.astype(jnp.bfloat16)

    tm = _round_up(m, 8) if m <= 1024 else 512       # big sublane-aligned tiles
    mp = _round_up(m, tm)
    if mp != m:
        a = jnp.pad(a, ((0, mp - m), (0, 0)))
    tn = n if n <= 512 else next((t for t in (512, 256, 128) if n % t == 0), n)
    grid = (mp // tm, n // tn)

    has_scale = scale is not None
    in_specs = [pl.BlockSpec((tm, k), lambda i, j: (i, 0)),
                pl.BlockSpec((k, tn), lambda i, j: (0, j))]
    args = [a, w]
    if has_scale:
        in_specs.append(pl.BlockSpec((1, tn), lambda i, j: (0, j)))
        args.append(scale)
    in_specs.append(pl.BlockSpec((1, tn), lambda i, j: (0, j)))
    args.append(bias)

    cost = pl.CostEstimate(
        flops=int(2 * mp * k * n), transcendentals=0,
        bytes_accessed=int(mp * k * 2 + w.size * w.dtype.itemsize + n * 8
                           + mp * n * jnp.dtype(out_dtype).itemsize))
    out = pl.pallas_call(
        functools.partial(_matmul_bias_act_kernel, relu=relu,
                          has_scale=has_scale),
        out_shape=jax.ShapeDtypeStruct((mp, n), out_dtype),
        grid=grid,
        in_specs=in_specs,
        out_specs=pl.BlockSpec((tm, tn), lambda i, j: (i, j)),
        compiler_params=pltpu.CompilerParams(
            dimension_semantics=("parallel", "parallel")),
        cost_estimate=cost,
    )(*args)
    return out[:m] if mp != m else out


def conv3x3_s1_fused(x, w_flat, bias, relu, residual=None):
    """Stride-1 / pad-1 3x3 conv + BN (+residual) (+ReLU), fully fused.

    x: (N,H,W,Cin) bf16; w_flat: (9*Cin, Cout) bf16; residual: (N,H,W,Cout)."""
    n, h, wd, cin = x.shape
    cout = w_flat.shape[1]
    # Flattened-row width: >= wd+2 halo, and m = h*wp a multiple of 16 so the
    # in-kernel (N, m, C) -> (N*m, C) merge stays bf16-tile aligned.
    wp = wd + 2
    while (h * wp) % 16:
        wp += 1
    m = h * wp
    rows = h + 3
    lp = rows * wp

    xp = jnp.pad(x, ((0, 0), (1, rows - h - 1), (1, wp - wd - 1), (0, 0)))
    xf = xp.reshape(n, lp, cin)
    tap_offsets = tuple(i * wp + j for i in range(3) for j in range(3))

    has_res = residual is not None
    tn = cout if cout <= 256 else 256
    grid = (cout // tn,)

    in_specs = [
        pl.BlockSpec((n, lp, cin), lambda j: (0, 0, 0)),
        pl.BlockSpec((9 * cin, tn), lambda j: (0, j)),
        pl.BlockSpec((1, tn), lambda j: (0, j)),
    ]
    args = [xf, w_flat, bias]
    if has_res:
        rf = jnp.pad(residual, ((0, 0), (0, 0), (0, wp - wd), (0, 0)))
        rf = rf.reshape(n * m, cout)
        in_specs.append(pl.BlockSpec((n * m, tn), lambda j: (0, j)))
        args.append(rf)

    cost = pl.CostEstimate(
        flops=int(2 * n * m * 9 * cin * cout), transcendentals=0,
        bytes_accessed=int(n * lp * cin * 2 + 9 * cin * cout * 2 + cout * 8
                           + n * m * cout * 2 * (2 if has_res else 1)))
    out = pl.pallas_call(
        functools.partial(_conv3x3_s1_kernel, tap_offsets=tap_offsets, m=m,
                          relu=relu, has_residual=has_res),
        out_shape=jax.ShapeDtypeStruct((n * m, cout), jnp.bfloat16),
        grid=grid,
        in_specs=in_specs,
        out_specs=pl.BlockSpec((n * m, tn), lambda j: (0, j)),
        compiler_params=pltpu.CompilerParams(dimension_semantics=("parallel",)),
        cost_estimate=cost,
    )(*args)
    # TODO(synk): the junk columns are still sliced off / re-padded in XLA;
    # chaining the padded flat layout between convs is left unimplemented.
    return out.reshape(n, h, wp, cout)[:, :, :wd, :]


def maxpool3x3s2(x):
    """3x3 / stride-2 / pad-1 max pool (NHWC), all images in one grid step.
    The stride-2 subsample is a cheap XLA strided slice of the kernel output."""
    n, h, wd, c = x.shape
    wp = wd + 2
    rows = h + 3
    lp = rows * wp
    m = h * wp
    xp = jnp.pad(x, ((0, 0), (1, rows - h - 1), (1, 1), (0, 0)),
                 constant_values=-jnp.inf)        # bf16 -inf is representable
    xf = xp.reshape(n, lp, c)
    taps = tuple(i * wp + j for i in range(3) for j in range(3))
    full = pl.pallas_call(
        functools.partial(_maxpool3x3_kernel, tap_offsets=taps, m=m),
        out_shape=jax.ShapeDtypeStruct((n, m, c), x.dtype),
        grid=(1,),
        in_specs=[pl.BlockSpec((n, lp, c), lambda i: (0, 0, 0))],
        out_specs=pl.BlockSpec((n, m, c), lambda i: (0, 0, 0)),
        compiler_params=pltpu.CompilerParams(dimension_semantics=("arbitrary",)),
    )(xf)
    full = full.reshape(n, h, wp, c)
    oh = (h - 1) // 2 + 1
    ow = (wd - 1) // 2 + 1
    return full[:, 0:2 * oh:2, 0:2 * ow:2, :]


def pallas_mil_pool(feats):
    """feats: (B, L, C) -> (avg (B,C) f32, max (B,C) f32), tiled over L."""
    b, l, c = feats.shape
    tl = next((t for t in (2048, 1024, 512, 256, 128, 64, 32, 16, 8)
               if l % t == 0), l)
    grid = (b, l // tl)
    avg, mx = pl.pallas_call(
        functools.partial(_mil_pool_kernel, inv_l=1.0 / l),
        out_shape=(jax.ShapeDtypeStruct((b, 1, c), jnp.float32),
                   jax.ShapeDtypeStruct((b, 1, c), jnp.float32)),
        grid=grid,
        in_specs=[pl.BlockSpec((1, tl, c), lambda i, j: (i, j, 0))],
        out_specs=(pl.BlockSpec((1, 1, c), lambda i, j: (i, 0, 0)),
                   pl.BlockSpec((1, 1, c), lambda i, j: (i, 0, 0))),
        scratch_shapes=[pltpu.VMEM((1, c), jnp.float32),
                        pltpu.VMEM((1, c), jnp.float32)],
        compiler_params=pltpu.CompilerParams(
            dimension_semantics=("parallel", "arbitrary")),
    )(feats)
    return avg.reshape(b, c), mx.reshape(b, c)


def mil_avg_max_pool(feats):
    """Adaptive avg + max pooling over (patches * h' * w') per channel."""
    b, l, c = feats.shape
    if l < 1024:
        # Tiny L (e.g. this test, L=2): a pallas_call costs more than the
        # reduction itself; use plain XLA.  Pallas path kept for real WSI L.
        xf = feats.astype(jnp.float32)
        return jnp.mean(xf, axis=1), jnp.max(xf, axis=1)
    return pallas_mil_pool(feats)


# ----------------------------------------------------------------------------
# JAX glue: im2col (strided convs only), conv wrappers, resnet blocks
# ----------------------------------------------------------------------------

def _im2col(x, kh, kw, stride, padding):
    n, h, w, c = x.shape
    oh = (h + 2 * padding - kh) // stride + 1
    ow = (w + 2 * padding - kw) // stride + 1
    xp = jnp.pad(x, ((0, 0), (padding, padding), (padding, padding), (0, 0)))
    cols = []
    for i in range(kh):
        for j in range(kw):
            cols.append(xp[:, i:i + stride * oh:stride,
                           j:j + stride * ow:stride, :])
    col = jnp.stack(cols, axis=3)                  # (N, OH, OW, kh*kw, C)
    return col.reshape(n * oh * ow, kh * kw * c), oh, ow


def conv_bn_matmul(x, w_flat, bias, kh, kw, stride, padding, relu):
    """Strided convs (7x7 stem, 3x3/s2) via im2col + fused matmul kernel.
    w_flat may carry zero-padded K rows (stem: K 147 -> 256)."""
    n = x.shape[0]
    cols, oh, ow = _im2col(x, kh, kw, stride, padding)
    k_pad = w_flat.shape[0]
    if cols.shape[1] != k_pad:
        cols = jnp.pad(cols, ((0, 0), (0, k_pad - cols.shape[1])))
    out = pallas_matmul_bias(cols, w_flat, bias, relu=relu)
    return out.reshape(n, oh, ow, w_flat.shape[1])


def conv1x1_bn(x, w_flat, bias, stride):
    """1x1 downsample conv: strided slice + fused matmul (no im2col)."""
    n = x.shape[0]
    xs = x[:, ::stride, ::stride, :]
    oh, ow, cin = xs.shape[1:]
    out = pallas_matmul_bias(xs.reshape(n * oh * ow, cin), w_flat, bias,
                             relu=False)
    return out.reshape(n, oh, ow, w_flat.shape[1])


def basic_block(x, bp):
    if bp['stride'] == 1:
        out = conv3x3_s1_fused(x, bp['w1'], bp['b1'], relu=True)
    else:
        out = conv_bn_matmul(x, bp['w1'], bp['b1'], 3, 3, bp['stride'], 1,
                             relu=True)
    if 'wd' in bp:
        identity = conv1x1_bn(x, bp['wd'], bp['bd'], bp['stride'])
    else:
        identity = x
    # relu(bn2(conv2(out)) + identity) fused in one kernel
    return conv3x3_s1_fused(out, bp['w2'], bp['b2'], relu=True,
                            residual=identity)


# ----------------------------------------------------------------------------
# Parameter preparation (one-time, outside jit)
# ----------------------------------------------------------------------------

def _prep_fc_int8(w, b, bn):
    """Linear + BatchNorm1d (eval): fold BN scale into W and quantize W to
    int8 with per-output-column scales (FCs are HBM weight-stream bound)."""
    scale_bn, bias_bn = _bn_fold(bn)
    wm = w.T * scale_bn                                  # (K, N), BN folded
    bias = bias_bn + b.reshape(1, -1) * scale_bn
    absmax = jnp.maximum(jnp.max(jnp.abs(wm), axis=0, keepdims=True), 1e-8)
    qscale = absmax / 127.0
    wq = jnp.clip(jnp.round(wm / qscale), -127, 127).astype(jnp.int8)
    return wq, qscale.astype(jnp.float32), bias.astype(jnp.float32)


def prepare_params(params, lane_min=128):
    """Fold BN into the weights, pad the 64-channel stages to 128 channels
    (lane-dense stores), reshape to matmul layouts, cast to bf16, and
    int8-quantize the FC weights."""
    prep = {}

    # Stem 7x7/s2: Cout 64 -> 128 (lane density), K 147 -> 256 (MXU aligned).
    w, bn = _pad_cout(params['conv1_w'], params['bn1'], lane_min)
    wm, bias = _fold_conv(w, bn)
    prep['stem_w'] = jnp.pad(wm, ((0, _round_up(wm.shape[0], 128) - wm.shape[0]),
                                  (0, 0)))
    prep['stem_b'] = bias

    layers = []
    for layer in params['layers']:
        blocks = []
        for blk in layer:
            b = {'stride': blk['stride']}
            for idx in (1, 2):
                w, bn = blk[f'conv{idx}_w'], blk[f'bn{idx}']
                w = _pad_cin(w, lane_min)
                w, bn = _pad_cout(w, bn, lane_min)
                b[f'w{idx}'], b[f'b{idx}'] = _fold_conv(w, bn)
            if 'ds_w' in blk:
                w, bn = blk['ds_w'], blk['ds_bn']
                w = _pad_cin(w, lane_min)
                w, bn = _pad_cout(w, bn, lane_min)
                b['wd'], b['bd'] = _fold_conv(w, bn)
            blocks.append(b)
        layers.append(blocks)
    prep['layers'] = layers

    for i in (1, 2):
        wq, qs, bias = _prep_fc_int8(params[f'fc{i}_w'], params[f'fc{i}_b'],
                                     params[f'fc{i}_bn'])
        prep[f'fc{i}_w'], prep[f'fc{i}_s'], prep[f'fc{i}_b'] = wq, qs, bias
    prep['fc3_w'] = params['fc3_w']
    prep['fc3_b'] = params['fc3_b']
    return prep


# ----------------------------------------------------------------------------
# Forward pass
# ----------------------------------------------------------------------------

def my_resnet_forward(prep, x):
    """x: (B, P, 3, H, W) float32 -> (B, num_classes=1) float32."""
    b, p, c, h, w = x.shape
    x = x.reshape(b * p, c, h, w).astype(jnp.float32)
    x = jnp.transpose(x, (0, 2, 3, 1)).astype(jnp.bfloat16)     # NCHW -> NHWC

    # resnet18 stem
    x = conv_bn_matmul(x, prep['stem_w'], prep['stem_b'], 7, 7, 2, 3, relu=True)
    x = maxpool3x3s2(x)

    # resnet18 layers 1-4
    for layer in prep['layers']:
        for blk in layer:
            x = basic_block(x, blk)

    # permute(0,2,1,3,4)-equivalent pooling over (P, h', w') per channel
    n, hh, ww, cf = x.shape
    feats = x.reshape(b, p * hh * ww, cf)
    avg, mx = mil_avg_max_pool(feats)
    x = jnp.concatenate([avg, mx], axis=1).astype(jnp.bfloat16)  # (B, 1024)

    # TODO(synk): nn.Dropout(0.2) is identity at inference; training-mode
    # dropout is not implemented.
    x = pallas_matmul_bias(x, prep['fc1_w'], prep['fc1_b'],
                           scale=prep['fc1_s'], relu=True)
    x = pallas_matmul_bias(x, prep['fc2_w'], prep['fc2_b'],
                           scale=prep['fc2_s'], relu=True)
    # last_fc (2048 -> 1): plain JAX (1-lane Pallas output = all masked stores)
    x = x.astype(jnp.float32) @ prep['fc3_w'].T + prep['fc3_b'].reshape(1, -1)
    return x


# ----------------------------------------------------------------------------
# Deterministic synthetic parameter initialization (resnet18, num_classes=1)
# ----------------------------------------------------------------------------

def _init_bn(key, c):
    k1, k2, k3, k4 = jax.random.split(key, 4)
    gamma = 1.0 + 0.1 * jax.random.normal(k1, (c,), jnp.float32)
    beta = 0.1 * jax.random.normal(k2, (c,), jnp.float32)
    mean = 0.05 * jax.random.normal(k3, (c,), jnp.float32)
    var = 1.0 + 0.1 * jax.random.uniform(k4, (c,), jnp.float32)
    return (gamma, beta, mean, var)


def _init_conv(key, cout, cin, k):
    fan_in = cin * k * k
    return jax.random.normal(key, (cout, cin, k, k),
                             jnp.float32) * (2.0 / fan_in) ** 0.5


def _init_linear(key, cout, cin):
    kw, kb = jax.random.split(key)
    bound = 1.0 / (cin ** 0.5)
    w = jax.random.uniform(kw, (cout, cin), jnp.float32, -bound, bound)
    b = jax.random.uniform(kb, (cout,), jnp.float32, -bound, bound)
    return w, b


def init_params(seed=0):
    key = jax.random.PRNGKey(seed)

    def nk():
        nonlocal key
        key, sub = jax.random.split(key)
        return sub

    params = {}
    params['conv1_w'] = _init_conv(nk(), 64, 3, 7)
    params['bn1'] = _init_bn(nk(), 64)

    layer_cfg = [(64, 64, (1, 1)), (64, 128, (2, 1)),
                 (128, 256, (2, 1)), (256, 512, (2, 1))]
    layers = []
    for cin, cout, strides in layer_cfg:
        blocks = []
        in_c = cin
        for s in strides:
            blk = {
                'stride': s,
                'conv1_w': _init_conv(nk(), cout, in_c, 3),
                'bn1': _init_bn(nk(), cout),
                'conv2_w': _init_conv(nk(), cout, cout, 3),
                'bn2': _init_bn(nk(), cout),
            }
            if s != 1 or in_c != cout:
                blk['ds_w'] = _init_conv(nk(), cout, in_c, 1)
                blk['ds_bn'] = _init_bn(nk(), cout)
            blocks.append(blk)
            in_c = cout
        layers.append(blocks)
    params['layers'] = layers

    n_features = 512 * 1 * 2          # resnet18: 512 * bl_exp(1) * (avg + max)
    params['fc1_w'], params['fc1_b'] = _init_linear(nk(), n_features * 2,
                                                    n_features)
    params['fc1_bn'] = _init_bn(nk(), n_features * 2)
    params['fc2_w'], params['fc2_b'] = _init_linear(nk(), n_features * 2,
                                                    n_features * 2)
    params['fc2_bn'] = _init_bn(nk(), n_features * 2)
    params['fc3_w'], params['fc3_b'] = _init_linear(nk(), 1, n_features * 2)
    return params


# ----------------------------------------------------------------------------
# Light numeric self-checks of the two non-standard kernels vs XLA references
# ----------------------------------------------------------------------------

def _self_check():
    k1, k2, k3, k4 = jax.random.split(jax.random.PRNGKey(1), 4)

    # fused stride-1 3x3 conv + BN + ReLU
    x = jax.random.normal(k1, (2, 8, 8, 128), jnp.float32)
    w = jax.random.normal(k2, (128, 128, 3, 3), jnp.float32) * 0.05
    bn = _init_bn(k3, 128)
    wm, bias = _fold_conv(w, bn)
    got = conv3x3_s1_fused(x.astype(jnp.bfloat16), wm, bias,
                           relu=True).astype(jnp.float32)
    ref = jax.lax.conv_general_dilated(
        x, w, window_strides=(1, 1), padding=((1, 1), (1, 1)),
        dimension_numbers=('NHWC', 'OIHW', 'NHWC'))
    scale, bb = _bn_fold(bn)
    ref = jnp.maximum(ref * scale.reshape(1, 1, 1, -1)
                      + bb.reshape(1, 1, 1, -1), 0.0)
    err = float(jnp.max(jnp.abs(got - ref)))
    assert err < 0.15, f"fused conv3x3 kernel mismatch: max|err|={err}"

    # int8-weight matmul + BN + ReLU
    a = jax.random.normal(k1, (4, 256), jnp.float32)
    w = jax.random.normal(k2, (512, 256), jnp.float32) * 0.05
    b = jax.random.normal(k3, (512,), jnp.float32) * 0.1
    bn = _init_bn(k4, 512)
    wq, qs, bias = _prep_fc_int8(w, b, bn)
    got = pallas_matmul_bias(a.astype(jnp.bfloat16), wq, bias, scale=qs,
                             relu=True).astype(jnp.float32)
    scale, bb = _bn_fold(bn)
    ref = jnp.maximum((a @ w.T + b.reshape(1, -1)) * scale + bb, 0.0)
    err = float(jnp.max(jnp.abs(got - ref)))
    assert err < 0.25, f"matmul kernel mismatch: max|err|={err}"


# ----------------------------------------------------------------------------
# Main
# ----------------------------------------------------------------------------

if __name__ == "__main__":
    _self_check()

    B, P, C, H, W = 2, 2, 3, 32, 32                 # (batch, patches, 3, H, W)
    key = jax.random.PRNGKey(0)
    x = jax.random.normal(key, (B, P, C, H, W), jnp.float32)

    params = init_params(seed=0)
    prep = prepare_params(params)                   # one-time weight prep
    fwd = jax.jit(functools.partial(my_resnet_forward, prep))

    out = jax.block_until_ready(fwd(x))
    assert out.shape == (B, 1), out.shape
    assert out.dtype == jnp.float32
    assert bool(jnp.all(jnp.isfinite(out)))
    print("KERNEL_OK")
</pallas_src>

<mosaic_0001>
module attributes {stable_mosaic.version = 11 : i64} {
  func.func @_conv3x3_s1_kernel(%arg0: i32, %arg1: memref<2x110x128xbf16, #tpu.memory_space<vmem>>, %arg2: memref<1152x128xbf16, #tpu.memory_space<vmem>>, %arg3: memref<1x128xf32, #tpu.memory_space<vmem>>, %arg4: memref<160x128xbf16, #tpu.memory_space<vmem>>) attributes {dimension_semantics = [#tpu.dimension_semantics<parallel>], iteration_bounds = array<i64: 1>, scalar_prefetch = 0 : i64, scratch_operands = 0 : i64, tpu.core_type = #tpu.core_type<tc>, window_params = [{pipeline_mode = #tpu.pipeline_mode<synchronous>, transform_indices = @transform_0, window_bounds = array<i64: 2, 110, 128>}, {transform_indices = @transform_1, window_bounds = array<i64: 1152, 128>}, {transform_indices = @transform_2, window_bounds = array<i64: 1, 128>}, {transform_indices = @transform_3, window_bounds = array<i64: 160, 128>}]} {
    %c0 = arith.constant 0 : index
    %c0_0 = arith.constant 0 : index
    %c0_1 = arith.constant 0 : index
    %0 = vector.load %arg1[%c0, %c0_0, %c0_1] : memref<2x110x128xbf16, #tpu.memory_space<vmem>>, vector<2x80x128xbf16>
    %1 = vector.shape_cast %0 : vector<2x80x128xbf16> to vector<160x128xbf16>
    %c0_2 = arith.constant 0 : index
    %c1 = arith.constant 1 : index
    %c0_3 = arith.constant 0 : index
    %2 = vector.load %arg1[%c0_2, %c1, %c0_3] : memref<2x110x128xbf16, #tpu.memory_space<vmem>>, vector<2x80x128xbf16>
    %3 = vector.shape_cast %2 : vector<2x80x128xbf16> to vector<160x128xbf16>
    %c0_4 = arith.constant 0 : index
    %c2 = arith.constant 2 : index
    %c0_5 = arith.constant 0 : index
    %4 = vector.load %arg1[%c0_4, %c2, %c0_5] : memref<2x110x128xbf16, #tpu.memory_space<vmem>>, vector<2x80x128xbf16>
    %5 = vector.shape_cast %4 : vector<2x80x128xbf16> to vector<160x128xbf16>
    %c0_6 = arith.constant 0 : index
    %c10 = arith.constant 10 : index
    %c0_7 = arith.constant 0 : index
    %6 = vector.load %arg1[%c0_6, %c10, %c0_7] : memref<2x110x128xbf16, #tpu.memory_space<vmem>>, vector<2x80x128xbf16>
    %7 = vector.shape_cast %6 : vector<2x80x128xbf16> to vector<160x128xbf16>
    %c0_8 = arith.constant 0 : index
    %c11 = arith.constant 11 : index
    %c0_9 = arith.constant 0 : index
    %8 = vector.load %arg1[%c0_8, %c11, %c0_9] : memref<2x110x128xbf16, #tpu.memory_space<vmem>>, vector<2x80x128xbf16>
    %9 = vector.shape_cast %8 : vector<2x80x128xbf16> to vector<160x128xbf16>
    %c0_10 = arith.constant 0 : index
    %c12 = arith.constant 12 : index
    %c0_11 = arith.constant 0 : index
    %10 = vector.load %arg1[%c0_10, %c12, %c0_11] : memref<2x110x128xbf16, #tpu.memory_space<vmem>>, vector<2x80x128xbf16>
    %11 = vector.shape_cast %10 : vector<2x80x128xbf16> to vector<160x128xbf16>
    %c0_12 = arith.constant 0 : index
    %c20 = arith.constant 20 : index
    %c0_13 = arith.constant 0 : index
    %12 = vector.load %arg1[%c0_12, %c20, %c0_13] : memref<2x110x128xbf16, #tpu.memory_space<vmem>>, vector<2x80x128xbf16>
    %13 = vector.shape_cast %12 : vector<2x80x128xbf16> to vector<160x128xbf16>
    %c0_14 = arith.constant 0 : index
    %c21 = arith.constant 21 : index
    %c0_15 = arith.constant 0 : index
    %14 = vector.load %arg1[%c0_14, %c21, %c0_15] : memref<2x110x128xbf16, #tpu.memory_space<vmem>>, vector<2x80x128xbf16>
    %15 = vector.shape_cast %14 : vector<2x80x128xbf16> to vector<160x128xbf16>
    %c0_16 = arith.constant 0 : index
    %c22 = arith.constant 22 : index
    %c0_17 = arith.constant 0 : index
    %16 = vector.load %arg1[%c0_16, %c22, %c0_17] : memref<2x110x128xbf16, #tpu.memory_space<vmem>>, vector<2x80x128xbf16>
    %17 = vector.shape_cast %16 : vector<2x80x128xbf16> to vector<160x128xbf16>
    %18 = tpu.concatenate %1, %3, %5, %7, %9, %11, %13, %15, %17 in 1 : vector<160x128xbf16>, vector<160x128xbf16>, vector<160x128xbf16>, vector<160x128xbf16>, vector<160x128xbf16>, vector<160x128xbf16>, vector<160x128xbf16>, vector<160x128xbf16>, vector<160x128xbf16> -> vector<160x1152xbf16>
    %c0_18 = arith.constant 0 : index
    %c0_19 = arith.constant 0 : index
    %19 = vector.load %arg2[%c0_18, %c0_19] : memref<1152x128xbf16, #tpu.memory_space<vmem>>, vector<1152x128xbf16>
    %cst = arith.constant dense<0.000000e+00> : vector<160x128xf32>
    %20 = tpu.matmul %18, %19, %cst {dimension_numbers = #tpu.dot_dimension_numbers<[1], [0], [0], [1], [0, 0, 1, 1], [], []>} : vector<160x1152xbf16>, vector<1152x128xbf16>, vector<160x128xf32> -> vector<160x128xf32>
    %c0_20 = arith.constant 0 : index
    %c0_21 = arith.constant 0 : index
    %21 = vector.load %arg3[%c0_20, %c0_21] : memref<1x128xf32, #tpu.memory_space<vmem>>, vector<1x128xf32>
    %22 = vector.broadcast %21 : vector<1x128xf32> to vector<160x128xf32>
    %23 = arith.addf %20, %22 : vector<160x128xf32>
    %cst_22 = arith.constant 0.000000e+00 : f32
    %24 = vector.broadcast %cst_22 : f32 to vector<160x128xf32>
    %25 = arith.maximumf %23, %24 : vector<160x128xf32>
    %26 = arith.truncf %25 : vector<160x128xf32> to vector<160x128xbf16>
    %c0_23 = arith.constant 0 : index
    %c0_24 = arith.constant 0 : index
    %27 = vector.load %arg4[%c0_23, %c0_24] : memref<160x128xbf16, #tpu.memory_space<vmem>>, vector<160x128xbf16>
    tpu.vector_store %arg4[%c0_23, %c0_24], %26 {strides = array<i32>} : memref<160x128xbf16, #tpu.memory_space<vmem>>, vector<160x128xbf16>,
    return
  }
  func.func @transform_0(%arg0: i32) -> (i32, i32, i32) {
    %c0_i32 = arith.constant 0 : i32
    %c0_i32_0 = arith.constant 0 : i32
    %c0_i32_1 = arith.constant 0 : i32
    %c0_i32_2 = arith.constant 0 : i32
    return %c0_i32, %c0_i32_0, %c0_i32_1 : i32, i32, i32
  }
  func.func @transform_1(%arg0: i32) -> (i32, i32) {
    %c0_i32 = arith.constant 0 : i32
    %c0_i32_0 = arith.constant 0 : i32
    return %c0_i32, %arg0 : i32, i32
  }
  func.func @transform_2(%arg0: i32) -> (i32, i32) {
    %c0_i32 = arith.constant 0 : i32
    %c0_i32_0 = arith.constant 0 : i32
    return %c0_i32, %arg0 : i32, i32
  }
  func.func @transform_3(%arg0: i32) -> (i32, i32) {
    %c0_i32 = arith.constant 0 : i32
    %c0_i32_0 = arith.constant 0 : i32
    return %c0_i32, %arg0 : i32, i32
  }
}

</mosaic_0001>

<llo_original>
// kernel: tpu_custom_call.1
$region0: #{tpu_custom_call.1}
  #allocation0 [shape = 'u32[]', space=smem, size = 0x4, offset = 0x4, fixed_abs, tag = 'smem constant byte address 0x4 - core index']
  #allocation1 [shape = 'u32[144,128]{1,0:T(1,128)}', space=vmem, size = 0x12000, scoped, tag = 'internal scratch']
  %s0 = inlined_call_operand.vmem [shape: bf16[2,110,128], index: 0, kind: input, shape index: {}]
  %s1 = inlined_call_operand.hbm [shape: bf16[1152,128], index: 1, kind: input, shape index: {}]
  %s2 = inlined_call_operand.vmem [shape: f32[1,128], index: 2, kind: input, shape index: {}]
  %s3 = inlined_call_operand.hbm [shape: bf16[160,128], index: 3, kind: output, shape index: {}]
  %s4 = sld [smem:[#allocation0]]
  $region26: #{tpu_custom_call.1} parent=0
    _
  %s6 = ssub.s32 1, %s4
  %s7 = scalar_select 0, %s6, %s4
  $region1: #{tpu_custom_call.1} parent=0
    #allocation2 [shape = 'u8[294912]{0}', space=vmem, size = 0x48000, scoped, tag = 'input window, operand 1, single buffered']
    #allocation3 [shape = 's32[1]{0}', space=sflag, size = 0x4, scoped, tag = 'scoped memory for tpu_custom_call.1']
    #allocation4 [shape = 's32[1]{0}', space=sflag, size = 0x4, scoped, tag = 'scoped memory for tpu_custom_call.1']
    #allocation5 [shape = 'u8[40960]{0}', space=vmem, size = 0xa000, scoped, tag = 'output window, operand 0, single buffered']
    %8 = vsyncpa [#allocation3], 0
    %9 = vsyncpa [#allocation4], 0
    // Predicated region
    $region2: #{tpu_custom_call.1} parent=1 // pred_check
      _
    $region3: #{tpu_custom_call.1} parent=1 // pred_check_branch
      %11 = sbr.rel (0) target = $region5
    $region4: #{tpu_custom_call.1} parent=1 // pred_region
      _
    $region5: #{tpu_custom_call.1} parent=1 // pred_fallthru
      _
    // Predicated region
    $region6: #{tpu_custom_call.1} parent=1 // pred_check
      _
    $region7: #{tpu_custom_call.1} parent=1 // pred_check_branch
      %13 = sbr.rel (0) target = $region9
    $region8: #{tpu_custom_call.1} parent=1 // pred_region
      %s15 = ssub.s32 9216, 9216
      %16 = vsyncadd [#allocation3], %s15
      %s17 = sshll.u32 [#allocation2], 4
      %s18 = int_to_ptr.vmem [resolvable:$true] %s17
      %23 = dma.hbm_to_vmem [thread:$0]  %s1, 9216, %s18, [#allocation3], 64, 64, 4
    $region9: #{tpu_custom_call.1} parent=1 // pred_fallthru
      _
    // Predicated region
    $region10: #{tpu_custom_call.1} parent=1 // pred_check
      _
    $region11: #{tpu_custom_call.1} parent=1 // pred_check_branch
      %25 = sbr.rel (0) target = $region13
    $region12: #{tpu_custom_call.1} parent=1 // pred_region
      _
    $region13: #{tpu_custom_call.1} parent=1 // pred_fallthru
      _
    // Predicated region
    $region14: #{tpu_custom_call.1} parent=1 // pred_check
      _
    $region15: #{tpu_custom_call.1} parent=1 // pred_check_branch
      %27 = sbr.rel (0) target = $region17
    $region16: #{tpu_custom_call.1} parent=1 // pred_region
      %28 = dma.done [#allocation3], 9216
    $region17: #{tpu_custom_call.1} parent=1 // pred_fallthru
      _
    %v30 = vld [vmem:[%s0] sm:$0xf]
    %v31 = vld [vmem:[%s0 + $0x4] sm:$0xf]
    %v32 = vld [vmem:[%s0 + $0x8] sm:$0xf]
    %v33 = vld [vmem:[%s0 + $0xc] sm:$0xf]
    %v34 = vld [vmem:[%s0 + $0x10] sm:$0xf]
    %v35 = vld [vmem:[%s0 + $0x14] sm:$0xf]
    %v36 = vld [vmem:[%s0 + $0x18] sm:$0xf]
    %v37 = vld [vmem:[%s0 + $0x1c] sm:$0xf]
    %v38 = vld [vmem:[%s0 + $0x20] sm:$0xf]
    %v39 = vld [vmem:[%s0 + $0x24] sm:$0xf]
    %v40 = vld [vmem:[%s0 + $0x38] sm:$0xf]
    %v41 = vld [vmem:[%s0 + $0x3c] sm:$0xf]
    %v42 = vld [vmem:[%s0 + $0x40] sm:$0xf]
    %v43 = vld [vmem:[%s0 + $0x44] sm:$0xf]
    %v44 = vld [vmem:[%s0 + $0x48] sm:$0xf]
    %v45 = vld [vmem:[%s0 + $0x4c] sm:$0xf]
    %v46 = vld [vmem:[%s0 + $0x50] sm:$0xf]
    %v47 = vld [vmem:[%s0 + $0x54] sm:$0xf]
    %v48 = vld [vmem:[%s0 + $0x58] sm:$0xf]
    %v49 = vld [vmem:[%s0 + $0x5c] sm:$0xf]
    %v50 = vld [vmem:[%s0 + $0x28] sm:$0x1]
    %v51 = vld [vmem:[%s0 + $0x60] sm:$0x1]
    %vm52 = vsmask.f32 3328
    %vm53 = vsmask.f32 7440
    %vm54 = vmor %vm52, %vm53
    %v56 = vshrl.u32 %v30, 16
    %v58 = vrot.slane %v56, 4
    %v59 = vshll.u32 %v30, 16
    %v61 = vrot.slane %v59, 5
    %v62 = vor.u32 %v58, %v61
    %v63 = vrot.slane %v62, 4
    %v65 = vshll.u32 %v31, 16
    %v67 = vrot.slane %v65, 5
    %v68 = vsel %vm54, %v63, %v67
    %v69 = vshrl.u32 %v31, 16
    %v71 = vrot.slane %v69, 4
    %v72 = vor.u32 %v71, %v67
    %v73 = vrot.slane %v72, 4
    %v75 = vshll.u32 %v32, 16
    %v77 = vrot.slane %v75, 5
    %v78 = vsel %vm54, %v73, %v77
    %v79 = vshrl.u32 %v32, 16
    %v81 = vrot.slane %v79, 4
    %v82 = vor.u32 %v81, %v77
    %v83 = vrot.slane %v82, 4
    %v85 = vshll.u32 %v33, 16
    %v87 = vrot.slane %v85, 5
    %v88 = vsel %vm54, %v83, %v87
    %v89 = vshrl.u32 %v33, 16
    %v91 = vrot.slane %v89, 4
    %v92 = vor.u32 %v91, %v87
    %v93 = vrot.slane %v92, 4
    %v95 = vshll.u32 %v34, 16
    %v97 = vrot.slane %v95, 5
    %v98 = vsel %vm54, %v93, %v97
    %v99 = vshrl.u32 %v34, 16
    %v101 = vrot.slane %v99, 4
    %v102 = vor.u32 %v101, %v97
    %v103 = vrot.slane %v102, 4
    %v105 = vshll.u32 %v35, 16
    %v107 = vrot.slane %v105, 5
    %v108 = vsel %vm54, %v103, %v107
    %v109 = vshrl.u32 %v35, 16
    %v111 = vrot.slane %v109, 4
    %v112 = vor.u32 %v111, %v107
    %v113 = vrot.slane %v112, 4
    %v115 = vshll.u32 %v36, 16
    %v117 = vrot.slane %v115, 5
    %v118 = vsel %vm54, %v113, %v117
    %v119 = vshrl.u32 %v36, 16
    %v121 = vrot.slane %v119, 4
    %v122 = vor.u32 %v121, %v117
    %v123 = vrot.slane %v122, 4
    %v125 = vshll.u32 %v37, 16
    %v127 = vrot.slane %v125, 5
    %v128 = vsel %vm54, %v123, %v127
    %v129 = vshrl.u32 %v37, 16
    %v131 = vrot.slane %v129, 4
    %v132 = vor.u32 %v131, %v127
    %v133 = vrot.slane %v132, 4
    %v135 = vshll.u32 %v38, 16
    %v137 = vrot.slane %v135, 5
    %v138 = vsel %vm54, %v133, %v137
    %v139 = vshrl.u32 %v38, 16
    %v141 = vrot.slane %v139, 4
    %v142 = vor.u32 %v141, %v137
    %v143 = vrot.slane %v142, 4
    %v145 = vshll.u32 %v39, 16
    %v147 = vrot.slane %v145, 5
    %v148 = vsel %vm54, %v143, %v147
    %v149 = vshrl.u32 %v39, 16
    %v151 = vrot.slane %v149, 4
    %v152 = vor.u32 %v151, %v147
    %v153 = vrot.slane %v152, 4
    %v155 = vshll.u32 %v50, 16
    %v157 = vrot.slane %v155, 5
    %v158 = vsel %vm54, %v153, %v157
    %v160 = vshrl.u32 %v40, 16
    %v162 = vrot.slane %v160, 4
    %v163 = vshll.u32 %v40, 16
    %v165 = vrot.slane %v163, 5
    %v166 = vor.u32 %v162, %v165
    %v167 = vrot.slane %v166, 4
    %v169 = vshll.u32 %v41, 16
    %v171 = vrot.slane %v169, 5
    %v172 = vsel %vm54, %v167, %v171
    %v173 = vshrl.u32 %v41, 16
    %v175 = vrot.slane %v173, 4
    %v176 = vor.u32 %v175, %v171
    %v177 = vrot.slane %v176, 4
    %v179 = vshll.u32 %v42, 16
    %v181 = vrot.slane %v179, 5
    %v182 = vsel %vm54, %v177, %v181
    %v183 = vshrl.u32 %v42, 16
    %v185 = vrot.slane %v183, 4
    %v186 = vor.u32 %v185, %v181
    %v187 = vrot.slane %v186, 4
    %v189 = vshll.u32 %v43, 16
    %v191 = vrot.slane %v189, 5
    %v192 = vsel %vm54, %v187, %v191
    %v193 = vshrl.u32 %v43, 16
    %v195 = vrot.slane %v193, 4
    %v196 = vor.u32 %v195, %v191
    %v197 = vrot.slane %v196, 4
    %v199 = vshll.u32 %v44, 16
    %v201 = vrot.slane %v199, 5
    %v202 = vsel %vm54, %v197, %v201
    %v203 = vshrl.u32 %v44, 16
    %v205 = vrot.slane %v203, 4
    %v206 = vor.u32 %v205, %v201
    %v207 = vrot.slane %v206, 4
    %v209 = vshll.u32 %v45, 16
    %v211 = vrot.slane %v209, 5
    %v212 = vsel %vm54, %v207, %v211
    %v213 = vshrl.u32 %v45, 16
    %v215 = vrot.slane %v213, 4
    %v216 = vor.u32 %v215, %v211
    %v217 = vrot.slane %v216, 4
    %v219 = vshll.u32 %v46, 16
    %v221 = vrot.slane %v219, 5
    %v222 = vsel %vm54, %v217, %v221
    %v223 = vshrl.u32 %v46, 16
    %v225 = vrot.slane %v223, 4
    %v226 = vor.u32 %v225, %v221
    %v227 = vrot.slane %v226, 4
    %v229 = vshll.u32 %v47, 16
    %v231 = vrot.slane %v229, 5
    %v232 = vsel %vm54, %v227, %v231
    %v233 = vshrl.u32 %v47, 16
    %v235 = vrot.slane %v233, 4
    %v236 = vor.u32 %v235, %v231
    %v237 = vrot.slane %v236, 4
    %v239 = vshll.u32 %v48, 16
    %v241 = vrot.slane %v239, 5
    %v242 = vsel %vm54, %v237, %v241
    %v243 = vshrl.u32 %v48, 16
    %v245 = vrot.slane %v243, 4
    %v246 = vor.u32 %v245, %v241
    %v247 = vrot.slane %v246, 4
    %v249 = vshll.u32 %v49, 16
    %v251 = vrot.slane %v249, 5
    %v252 = vsel %vm54, %v247, %v251
    %v253 = vshrl.u32 %v49, 16
    %v255 = vrot.slane %v253, 4
    %v256 = vor.u32 %v255, %v251
    %v257 = vrot.slane %v256, 4
    %v259 = vshll.u32 %v51, 16
    %v261 = vrot.slane %v259, 5
    %v262 = vsel %vm54, %v257, %v261
    %v263 = vld [vmem:[%s0] sm:$0xe]
    %v264 = vld [vmem:[%s0 + $0x38] sm:$0xe]
    %vm287 = vcmask 1042432
    %vm288 = vcmask 1046532
    %vm289 = vmor %vm287, %vm288
    %v290 = vrot.slane %v263, 5
    %v291 = vrot.slane %v290, 4
    %v292 = vrot.slane %v31, 5
    %v293 = vsel %vm289, %v291, %v292
    %v294 = vrot.slane %v292, 4
    %v295 = vrot.slane %v32, 5
    %v296 = vsel %vm289, %v294, %v295
    %v297 = vrot.slane %v295, 4
    %v298 = vrot.slane %v33, 5
    %v299 = vsel %vm289, %v297, %v298
    %v300 = vrot.slane %v298, 4
    %v301 = vrot.slane %v34, 5
    %v302 = vsel %vm289, %v300, %v301
    %v303 = vrot.slane %v301, 4
    %v304 = vrot.slane %v35, 5
    %v305 = vsel %vm289, %v303, %v304
    %v306 = vrot.slane %v304, 4
    %v307 = vrot.slane %v36, 5
    %v308 = vsel %vm289, %v306, %v307
    %v309 = vrot.slane %v307, 4
    %v310 = vrot.slane %v37, 5
    %v311 = vsel %vm289, %v309, %v310
    %v312 = vrot.slane %v310, 4
    %v313 = vrot.slane %v38, 5
    %v314 = vsel %vm289, %v312, %v313
    %v315 = vrot.slane %v313, 4
    %v316 = vrot.slane %v39, 5
    %v317 = vsel %vm289, %v315, %v316
    %v318 = vrot.slane %v316, 4
    %v319 = vrot.slane %v50, 5
    %v320 = vsel %vm289, %v318, %v319
    %v321 = vrot.slane %v264, 5
    %v322 = vrot.slane %v321, 4
    %v323 = vrot.slane %v41, 5
    %v324 = vsel %vm289, %v322, %v323
    %v325 = vrot.slane %v323, 4
    %v326 = vrot.slane %v42, 5
    %v327 = vsel %vm289, %v325, %v326
    %v328 = vrot.slane %v326, 4
    %v329 = vrot.slane %v43, 5
    %v330 = vsel %vm289, %v328, %v329
    %v331 = vrot.slane %v329, 4
    %v332 = vrot.slane %v44, 5
    %v333 = vsel %vm289, %v331, %v332
    %v334 = vrot.slane %v332, 4
    %v335 = vrot.slane %v45, 5
    %v336 = vsel %vm289, %v334, %v335
    %v337 = vrot.slane %v335, 4
    %v338 = vrot.slane %v46, 5
    %v339 = vsel %vm289, %v337, %v338
    %v340 = vrot.slane %v338, 4
    %v341 = vrot.slane %v47, 5
    %v342 = vsel %vm289, %v340, %v341
    %v343 = vrot.slane %v341, 4
    %v344 = vrot.slane %v48, 5
    %v345 = vsel %vm289, %v343, %v344
    %v346 = vrot.slane %v344, 4
    %v347 = vrot.slane %v49, 5
    %v348 = vsel %vm289, %v346, %v347
    %v349 = vrot.slane %v347, 4
    %v350 = vrot.slane %v51, 5
    %v351 = vsel %vm289, %v349, %v350
    %v352 = vld [vmem:[%s0 + $0x4] sm:$0xe]
    %v353 = vld [vmem:[%s0 + $0x28] sm:$0xf]
    %v354 = vld [vmem:[%s0 + $0x2c] sm:$0x1]
    %v355 = vld [vmem:[%s0 + $0x3c] sm:$0xe]
    %v356 = vld [vmem:[%s0 + $0x60] sm:$0xf]
    %v357 = vld [vmem:[%s0 + $0x64] sm:$0x1]
    %v364 = vrot.slane %v352, 5
    %v365 = vrot.slane %v364, 4
    %v366 = vsel %vm289, %v365, %v295
    %v367 = vrot.slane %v353, 5
    %v368 = vsel %vm289, %v318, %v367
    %v369 = vrot.slane %v367, 4
    %v370 = vrot.slane %v354, 5
    %v371 = vsel %vm289, %v369, %v370
    %v372 = vrot.slane %v355, 5
    %v373 = vrot.slane %v372, 4
    %v374 = vsel %vm289, %v373, %v326
    %v375 = vrot.slane %v356, 5
    %v376 = vsel %vm289, %v349, %v375
    %v377 = vrot.slane %v375, 4
    %v378 = vrot.slane %v357, 5
    %v379 = vsel %vm289, %v377, %v378
    %v380 = vld [vmem:[%s0 + $0x2c] sm:$0x3]
    %v381 = vld [vmem:[%s0 + $0x64] sm:$0x3]
    %vm382 = vsmask.f32 2304
    %vm383 = vsmask.f32 6416
    %vm384 = vmor %vm382, %vm383
    %v386 = vshrl.u32 %v352, 16
    %v388 = vrot.slane %v386, 5
    %v389 = vshll.u32 %v352, 16
    %v391 = vrot.slane %v389, 6
    %v392 = vor.u32 %v388, %v391
    %v393 = vrot.slane %v392, 4
    %v394 = vrot.slane %v79, 5
    %v395 = vrot.slane %v75, 6
    %v396 = vor.u32 %v394, %v395
    %v397 = vsel %vm384, %v393, %v396
    %v398 = vrot.slane %v396, 4
    %v399 = vrot.slane %v89, 5
    %v400 = vrot.slane %v85, 6
    %v401 = vor.u32 %v399, %v400
    %v402 = vsel %vm384, %v398, %v401
    %v403 = vrot.slane %v401, 4
    %v404 = vrot.slane %v99, 5
    %v405 = vrot.slane %v95, 6
    %v406 = vor.u32 %v404, %v405
    %v407 = vsel %vm384, %v403, %v406
    %v408 = vrot.slane %v406, 4
    %v409 = vrot.slane %v109, 5
    %v410 = vrot.slane %v105, 6
    %v411 = vor.u32 %v409, %v410
    %v412 = vsel %vm384, %v408, %v411
    %v413 = vrot.slane %v411, 4
    %v414 = vrot.slane %v119, 5
    %v415 = vrot.slane %v115, 6
    %v416 = vor.u32 %v414, %v415
    %v417 = vsel %vm384, %v413, %v416
    %v418 = vrot.slane %v416, 4
    %v419 = vrot.slane %v129, 5
    %v420 = vrot.slane %v125, 6
    %v421 = vor.u32 %v419, %v420
    %v422 = vsel %vm384, %v418, %v421
    %v423 = vrot.slane %v421, 4
    %v424 = vrot.slane %v139, 5
    %v425 = vrot.slane %v135, 6
    %v426 = vor.u32 %v424, %v425
    %v427 = vsel %vm384, %v423, %v426
    %v428 = vrot.slane %v426, 4
    %v429 = vrot.slane %v149, 5
    %v430 = vrot.slane %v145, 6
    %v431 = vor.u32 %v429, %v430
    %v432 = vsel %vm384, %v428, %v431
    %v433 = vrot.slane %v431, 4
    %v435 = vshrl.u32 %v353, 16
    %v437 = vrot.slane %v435, 5
    %v438 = vshll.u32 %v353, 16
    %v440 = vrot.slane %v438, 6
    %v441 = vor.u32 %v437, %v440
    %v442 = vsel %vm384, %v433, %v441
    %v443 = vrot.slane %v441, 4
    %v445 = vshrl.u32 %v380, 16
    %v447 = vrot.slane %v445, 5
    %v448 = vshll.u32 %v380, 16
    %v450 = vrot.slane %v448, 6
    %v451 = vor.u32 %v447, %v450
    %v452 = vsel %vm384, %v443, %v451
    %v454 = vshrl.u32 %v355, 16
    %v456 = vrot.slane %v454, 5
    %v457 = vshll.u32 %v355, 16
    %v459 = vrot.slane %v457, 6
    %v460 = vor.u32 %v456, %v459
    %v461 = vrot.slane %v460, 4
    %v462 = vrot.slane %v183, 5
    %v463 = vrot.slane %v179, 6
    %v464 = vor.u32 %v462, %v463
    %v465 = vsel %vm384, %v461, %v464
    %v466 = vrot.slane %v464, 4
    %v467 = vrot.slane %v193, 5
    %v468 = vrot.slane %v189, 6
    %v469 = vor.u32 %v467, %v468
    %v470 = vsel %vm384, %v466, %v469
    %v471 = vrot.slane %v469, 4
    %v472 = vrot.slane %v203, 5
    %v473 = vrot.slane %v199, 6
    %v474 = vor.u32 %v472, %v473
    %v475 = vsel %vm384, %v471, %v474
    %v476 = vrot.slane %v474, 4
    %v477 = vrot.slane %v213, 5
    %v478 = vrot.slane %v209, 6
    %v479 = vor.u32 %v477, %v478
    %v480 = vsel %vm384, %v476, %v479
    %v481 = vrot.slane %v479, 4
    %v482 = vrot.slane %v223, 5
    %v483 = vrot.slane %v219, 6
    %v484 = vor.u32 %v482, %v483
    %v485 = vsel %vm384, %v481, %v484
    %v486 = vrot.slane %v484, 4
    %v487 = vrot.slane %v233, 5
    %v488 = vrot.slane %v229, 6
    %v489 = vor.u32 %v487, %v488
    %v490 = vsel %vm384, %v486, %v489
    %v491 = vrot.slane %v489, 4
    %v492 = vrot.slane %v243, 5
    %v493 = vrot.slane %v239, 6
    %v494 = vor.u32 %v492, %v493
    %v495 = vsel %vm384, %v491, %v494
    %v496 = vrot.slane %v494, 4
    %v497 = vrot.slane %v253, 5
    %v498 = vrot.slane %v249, 6
    %v499 = vor.u32 %v497, %v498
    %v500 = vsel %vm384, %v496, %v499
    %v501 = vrot.slane %v499, 4
    %v503 = vshrl.u32 %v356, 16
    %v505 = vrot.slane %v503, 5
    %v506 = vshll.u32 %v356, 16
    %v508 = vrot.slane %v506, 6
    %v509 = vor.u32 %v505, %v508
    %v510 = vsel %vm384, %v501, %v509
    %v511 = vrot.slane %v509, 4
    %v513 = vshrl.u32 %v381, 16
    %v515 = vrot.slane %v513, 5
    %v516 = vshll.u32 %v381, 16
    %v518 = vrot.slane %v516, 6
    %v519 = vor.u32 %v515, %v518
    %v520 = vsel %vm384, %v511, %v519
    %v521 = vld [vmem:[%s0 + $0x4] sm:$0xc]
    %v522 = vld [vmem:[%s0 + $0x3c] sm:$0xc]
    %vm527 = vcmask 1041408
    %vm528 = vcmask 1045508
    %vm529 = vmor %vm527, %vm528
    %v530 = vrot.slane %v521, 6
    %v531 = vrot.slane %v530, 4
    %v532 = vrot.slane %v32, 6
    %v533 = vsel %vm529, %v531, %v532
    %v534 = vrot.slane %v532, 4
    %v535 = vrot.slane %v33, 6
    %v536 = vsel %vm529, %v534, %v535
    %v537 = vrot.slane %v535, 4
    %v538 = vrot.slane %v34, 6
    %v539 = vsel %vm529, %v537, %v538
    %v540 = vrot.slane %v538, 4
    %v541 = vrot.slane %v35, 6
    %v542 = vsel %vm529, %v540, %v541
    %v543 = vrot.slane %v541, 4
    %v544 = vrot.slane %v36, 6
    %v545 = vsel %vm529, %v543, %v544
    %v546 = vrot.slane %v544, 4
    %v547 = vrot.slane %v37, 6
    %v548 = vsel %vm529, %v546, %v547
    %v549 = vrot.slane %v547, 4
    %v550 = vrot.slane %v38, 6
    %v551 = vsel %vm529, %v549, %v550
    %v552 = vrot.slane %v550, 4
    %v553 = vrot.slane %v39, 6
    %v554 = vsel %vm529, %v552, %v553
    %v555 = vrot.slane %v553, 4
    %v556 = vrot.slane %v353, 6
    %v557 = vsel %vm529, %v555, %v556
    %v558 = vrot.slane %v556, 4
    %v559 = vrot.slane %v380, 6
    %v560 = vsel %vm529, %v558, %v559
    %v561 = vrot.slane %v522, 6
    %v562 = vrot.slane %v561, 4
    %v563 = vrot.slane %v42, 6
    %v564 = vsel %vm529, %v562, %v563
    %v565 = vrot.slane %v563, 4
    %v566 = vrot.slane %v43, 6
    %v567 = vsel %vm529, %v565, %v566
    %v568 = vrot.slane %v566, 4
    %v569 = vrot.slane %v44, 6
    %v570 = vsel %vm529, %v568, %v569
    %v571 = vrot.slane %v569, 4
    %v572 = vrot.slane %v45, 6
    %v573 = vsel %vm529, %v571, %v572
    %v574 = vrot.slane %v572, 4
    %v575 = vrot.slane %v46, 6
    %v576 = vsel %vm529, %v574, %v575
    %v577 = vrot.slane %v575, 4
    %v578 = vrot.slane %v47, 6
    %v579 = vsel %vm529, %v577, %v578
    %v580 = vrot.slane %v578, 4
    %v581 = vrot.slane %v48, 6
    %v582 = vsel %vm529, %v580, %v581
    %v583 = vrot.slane %v581, 4
    %v584 = vrot.slane %v49, 6
    %v585 = vsel %vm529, %v583, %v584
    %v586 = vrot.slane %v584, 4
    %v587 = vrot.slane %v356, 6
    %v588 = vsel %vm529, %v586, %v587
    %v589 = vrot.slane %v587, 4
    %v590 = vrot.slane %v381, 6
    %v591 = vsel %vm529, %v589, %v590
    %v592 = vld [vmem:[%s0 + $0x8] sm:$0xc]
    %v593 = vld [vmem:[%s0 + $0x2c] sm:$0xf]
    %v594 = vld [vmem:[%s0 + $0x30] sm:$0x3]
    %v595 = vld [vmem:[%s0 + $0x40] sm:$0xc]
    %v596 = vld [vmem:[%s0 + $0x64] sm:$0xf]
    %v597 = vld [vmem:[%s0 + $0x68] sm:$0x3]
    %v604 = vrot.slane %v592, 6
    %v605 = vrot.slane %v604, 4
    %v606 = vsel %vm529, %v605, %v535
    %v607 = vrot.slane %v593, 6
    %v608 = vsel %vm529, %v558, %v607
    %v609 = vrot.slane %v607, 4
    %v610 = vrot.slane %v594, 6
    %v611 = vsel %vm529, %v609, %v610
    %v612 = vrot.slane %v595, 6
    %v613 = vrot.slane %v612, 4
    %v614 = vsel %vm529, %v613, %v566
    %v615 = vrot.slane %v596, 6
    %v616 = vsel %vm529, %v589, %v615
    %v617 = vrot.slane %v615, 4
    %v618 = vrot.slane %v597, 6
    %v619 = vsel %vm529, %v617, %v618
    %v620 = vld [vmem:[%s0 + $0x30] sm:$0x7]
    %v621 = vld [vmem:[%s0 + $0x68] sm:$0x7]
    %vm622 = vsmask.f32 1280
    %vm623 = vsmask.f32 5392
    %vm624 = vmor %vm622, %vm623
    %v626 = vshrl.u32 %v592, 16
    %v628 = vrot.slane %v626, 6
    %v629 = vshll.u32 %v592, 16
    %v631 = vrot.slane %v629, 7
    %v632 = vor.u32 %v628, %v631
    %v633 = vrot.slane %v632, 4
    %v634 = vrot.slane %v89, 6
    %v635 = vrot.slane %v85, 7
    %v636 = vor.u32 %v634, %v635
    %v637 = vsel %vm624, %v633, %v636
    %v638 = vrot.slane %v636, 4
    %v639 = vrot.slane %v99, 6
    %v640 = vrot.slane %v95, 7
    %v641 = vor.u32 %v639, %v640
    %v642 = vsel %vm624, %v638, %v641
    %v643 = vrot.slane %v641, 4
    %v644 = vrot.slane %v109, 6
    %v645 = vrot.slane %v105, 7
    %v646 = vor.u32 %v644, %v645
    %v647 = vsel %vm624, %v643, %v646
    %v648 = vrot.slane %v646, 4
    %v649 = vrot.slane %v119, 6
    %v650 = vrot.slane %v115, 7
    %v651 = vor.u32 %v649, %v650
    %v652 = vsel %vm624, %v648, %v651
    %v653 = vrot.slane %v651, 4
    %v654 = vrot.slane %v129, 6
    %v655 = vrot.slane %v125, 7
    %v656 = vor.u32 %v654, %v655
    %v657 = vsel %vm624, %v653, %v656
    %v658 = vrot.slane %v656, 4
    %v659 = vrot.slane %v139, 6
    %v660 = vrot.slane %v135, 7
    %v661 = vor.u32 %v659, %v660
    %v662 = vsel %vm624, %v658, %v661
    %v663 = vrot.slane %v661, 4
    %v664 = vrot.slane %v149, 6
    %v665 = vrot.slane %v145, 7
    %v666 = vor.u32 %v664, %v665
    %v667 = vsel %vm624, %v663, %v666
    %v668 = vrot.slane %v666, 4
    %v669 = vrot.slane %v435, 6
    %v670 = vrot.slane %v438, 7
    %v671 = vor.u32 %v669, %v670
    %v672 = vsel %vm624, %v668, %v671
    %v673 = vrot.slane %v671, 4
    %v675 = vshrl.u32 %v593, 16
    %v677 = vrot.slane %v675, 6
    %v678 = vshll.u32 %v593, 16
    %v680 = vrot.slane %v678, 7
    %v681 = vor.u32 %v677, %v680
    %v682 = vsel %vm624, %v673, %v681
    %v683 = vrot.slane %v681, 4
    %v685 = vshrl.u32 %v620, 16
    %v687 = vrot.slane %v685, 6
    %v688 = vshll.u32 %v620, 16
    %v690 = vrot.slane %v688, 7
    %v691 = vor.u32 %v687, %v690
    %v692 = vsel %vm624, %v683, %v691
    %v694 = vshrl.u32 %v595, 16
    %v696 = vrot.slane %v694, 6
    %v697 = vshll.u32 %v595, 16
    %v699 = vrot.slane %v697, 7
    %v700 = vor.u32 %v696, %v699
    %v701 = vrot.slane %v700, 4
    %v702 = vrot.slane %v193, 6
    %v703 = vrot.slane %v189, 7
    %v704 = vor.u32 %v702, %v703
    %v705 = vsel %vm624, %v701, %v704
    %v706 = vrot.slane %v704, 4
    %v707 = vrot.slane %v203, 6
    %v708 = vrot.slane %v199, 7
    %v709 = vor.u32 %v707, %v708
    %v710 = vsel %vm624, %v706, %v709
    %v711 = vrot.slane %v709, 4
    %v712 = vrot.slane %v213, 6
    %v713 = vrot.slane %v209, 7
    %v714 = vor.u32 %v712, %v713
    %v715 = vsel %vm624, %v711, %v714
    %v716 = vrot.slane %v714, 4
    %v717 = vrot.slane %v223, 6
    %v718 = vrot.slane %v219, 7
    %v719 = vor.u32 %v717, %v718
    %v720 = vsel %vm624, %v716, %v719
    %v721 = vrot.slane %v719, 4
    %v722 = vrot.slane %v233, 6
    %v723 = vrot.slane %v229, 7
    %v724 = vor.u32 %v722, %v723
    %v725 = vsel %vm624, %v721, %v724
    %v726 = vrot.slane %v724, 4
    %v727 = vrot.slane %v243, 6
    %v728 = vrot.slane %v239, 7
    %v729 = vor.u32 %v727, %v728
    %v730 = vsel %vm624, %v726, %v729
    %v731 = vrot.slane %v729, 4
    %v732 = vrot.slane %v253, 6
    %v733 = vrot.slane %v249, 7
    %v734 = vor.u32 %v732, %v733
    %v735 = vsel %vm624, %v731, %v734
    %v736 = vrot.slane %v734, 4
    %v737 = vrot.slane %v503, 6
    %v738 = vrot.slane %v506, 7
    %v739 = vor.u32 %v737, %v738
    %v740 = vsel %vm624, %v736, %v739
    %v741 = vrot.slane %v739, 4
    %v743 = vshrl.u32 %v596, 16
    %v745 = vrot.slane %v743, 6
    %v746 = vshll.u32 %v596, 16
    %v748 = vrot.slane %v746, 7
    %v749 = vor.u32 %v745, %v748
    %v750 = vsel %vm624, %v741, %v749
    %v751 = vrot.slane %v749, 4
    %v753 = vshrl.u32 %v621, 16
    %v755 = vrot.slane %v753, 6
    %v756 = vshll.u32 %v621, 16
    %v758 = vrot.slane %v756, 7
    %v759 = vor.u32 %v755, %v758
    %v760 = vsel %vm624, %v751, %v759
    %v761 = vld [vmem:[%s0 + $0x8] sm:$0x8]
    %v762 = vld [vmem:[%s0 + $0x40] sm:$0x8]
    %vm767 = vcmask 1040384
    %vm768 = vcmask 1044484
    %vm769 = vmor %vm767, %vm768
    %v770 = vrot.slane %v761, 7
    %v771 = vrot.slane %v770, 4
    %v772 = vrot.slane %v33, 7
    %v773 = vsel %vm769, %v771, %v772
    %v774 = vrot.slane %v772, 4
    %v775 = vrot.slane %v34, 7
    %v776 = vsel %vm769, %v774, %v775
    %v777 = vrot.slane %v775, 4
    %v778 = vrot.slane %v35, 7
    %v779 = vsel %vm769, %v777, %v778
    %v780 = vrot.slane %v778, 4
    %v781 = vrot.slane %v36, 7
    %v782 = vsel %vm769, %v780, %v781
    %v783 = vrot.slane %v781, 4
    %v784 = vrot.slane %v37, 7
    %v785 = vsel %vm769, %v783, %v784
    %v786 = vrot.slane %v784, 4
    %v787 = vrot.slane %v38, 7
    %v788 = vsel %vm769, %v786, %v787
    %v789 = vrot.slane %v787, 4
    %v790 = vrot.slane %v39, 7
    %v791 = vsel %vm769, %v789, %v790
    %v792 = vrot.slane %v790, 4
    %v793 = vrot.slane %v353, 7
    %v794 = vsel %vm769, %v792, %v793
    %v795 = vrot.slane %v793, 4
    %v796 = vrot.slane %v593, 7
    %v797 = vsel %vm769, %v795, %v796
    %v798 = vrot.slane %v796, 4
    %v799 = vrot.slane %v620, 7
    %v800 = vsel %vm769, %v798, %v799
    %v801 = vrot.slane %v762, 7
    %v802 = vrot.slane %v801, 4
    %v803 = vrot.slane %v43, 7
    %v804 = vsel %vm769, %v802, %v803
    %v805 = vrot.slane %v803, 4
    %v806 = vrot.slane %v44, 7
    %v807 = vsel %vm769, %v805, %v806
    %v808 = vrot.slane %v806, 4
    %v809 = vrot.slane %v45, 7
    %v810 = vsel %vm769, %v808, %v809
    %v811 = vrot.slane %v809, 4
    %v812 = vrot.slane %v46, 7
    %v813 = vsel %vm769, %v811, %v812
    %v814 = vrot.slane %v812, 4
    %v815 = vrot.slane %v47, 7
    %v816 = vsel %vm769, %v814, %v815
    %v817 = vrot.slane %v815, 4
    %v818 = vrot.slane %v48, 7
    %v819 = vsel %vm769, %v817, %v818
    %v820 = vrot.slane %v818, 4
    %v821 = vrot.slane %v49, 7
    %v822 = vsel %vm769, %v820, %v821
    %v823 = vrot.slane %v821, 4
    %v824 = vrot.slane %v356, 7
    %v825 = vsel %vm769, %v823, %v824
    %v826 = vrot.slane %v824, 4
    %v827 = vrot.slane %v596, 7
    %v828 = vsel %vm769, %v826, %v827
    %v829 = vrot.slane %v827, 4
    %v830 = vrot.slane %v621, 7
    %v831 = vsel %vm769, %v829, %v830
    %v834 = vunpack.c.l.b16 %v30
    %v835 = vunpack.c.l.b16 %v31
    %v836 = vunpack.c.l.b16 %v32
    %v837 = vunpack.c.l.b16 %v33
    %v838 = vunpack.c.l.b16 %v34
    %v839 = vunpack.c.l.b16 %v35
    %v840 = vunpack.c.l.b16 %v36
    %v841 = vunpack.c.l.b16 %v37
    %v842 = vunpack.c.l.b16 %v38
    %v843 = vunpack.c.l.b16 %v39
    %v844 = vunpack.c.l.b16 %v40
    %v845 = vunpack.c.l.b16 %v41
    %v846 = vunpack.c.l.b16 %v42
    %v847 = vunpack.c.l.b16 %v43
    %v848 = vunpack.c.l.b16 %v44
    %v849 = vunpack.c.l.b16 %v45
    %v850 = vunpack.c.l.b16 %v46
    %v851 = vunpack.c.l.b16 %v47
    %v852 = vunpack.c.l.b16 %v48
    %v853 = vunpack.c.l.b16 %v49
    %v854 = vpack.c.b16 %v835, %v834
    %v855 = vpack.c.b16 %v837, %v836
    %v856 = vpack.c.b16 %v839, %v838
    %v857 = vpack.c.b16 %v841, %v840
    %v858 = vpack.c.b16 %v843, %v842
    %v859 = vpack.c.b16 %v845, %v844
    %v860 = vpack.c.b16 %v847, %v846
    %v861 = vpack.c.b16 %v849, %v848
    %v862 = vpack.c.b16 %v851, %v850
    %v863 = vpack.c.b16 %v853, %v852
    %v874 = vunpack.c.l.b16 %v68
    %v875 = vunpack.c.l.b16 %v78
    %v876 = vunpack.c.l.b16 %v88
    %v877 = vunpack.c.l.b16 %v98
    %v878 = vunpack.c.l.b16 %v108
    %v879 = vunpack.c.l.b16 %v118
    %v880 = vunpack.c.l.b16 %v128
    %v881 = vunpack.c.l.b16 %v138
    %v882 = vunpack.c.l.b16 %v148
    %v883 = vunpack.c.l.b16 %v158
    %v884 = vunpack.c.l.b16 %v172
    %v885 = vunpack.c.l.b16 %v182
    %v886 = vunpack.c.l.b16 %v192
    %v887 = vunpack.c.l.b16 %v202
    %v888 = vunpack.c.l.b16 %v212
    %v889 = vunpack.c.l.b16 %v222
    %v890 = vunpack.c.l.b16 %v232
    %v891 = vunpack.c.l.b16 %v242
    %v892 = vunpack.c.l.b16 %v252
    %v893 = vunpack.c.l.b16 %v262
    %v894 = vpack.c.b16 %v875, %v874
    %v895 = vpack.c.b16 %v877, %v876
    %v896 = vpack.c.b16 %v879, %v878
    %v897 = vpack.c.b16 %v881, %v880
    %v898 = vpack.c.b16 %v883, %v882
    %v899 = vpack.c.b16 %v885, %v884
    %v900 = vpack.c.b16 %v887, %v886
    %v901 = vpack.c.b16 %v889, %v888
    %v902 = vpack.c.b16 %v891, %v890
    %v903 = vpack.c.b16 %v893, %v892
    %v914 = vunpack.c.l.b16 %v293
    %v915 = vunpack.c.l.b16 %v296
    %v916 = vunpack.c.l.b16 %v299
    %v917 = vunpack.c.l.b16 %v302
    %v918 = vunpack.c.l.b16 %v305
    %v919 = vunpack.c.l.b16 %v308
    %v920 = vunpack.c.l.b16 %v311
    %v921 = vunpack.c.l.b16 %v314
    %v922 = vunpack.c.l.b16 %v317
    %v923 = vunpack.c.l.b16 %v320
    %v924 = vunpack.c.l.b16 %v324
    %v925 = vunpack.c.l.b16 %v327
    %v926 = vunpack.c.l.b16 %v330
    %v927 = vunpack.c.l.b16 %v333
    %v928 = vunpack.c.l.b16 %v336
    %v929 = vunpack.c.l.b16 %v339
    %v930 = vunpack.c.l.b16 %v342
    %v931 = vunpack.c.l.b16 %v345
    %v932 = vunpack.c.l.b16 %v348
    %v933 = vunpack.c.l.b16 %v351
    %v934 = vpack.c.b16 %v915, %v914
    %v935 = vpack.c.b16 %v917, %v916
    %v936 = vpack.c.b16 %v919, %v918
    %v937 = vpack.c.b16 %v921, %v920
    %v938 = vpack.c.b16 %v923, %v922
    %v939 = vpack.c.b16 %v925, %v924
    %v940 = vpack.c.b16 %v927, %v926
    %v941 = vpack.c.b16 %v929, %v928
    %v942 = vpack.c.b16 %v931, %v930
    %v943 = vpack.c.b16 %v933, %v932
    %v954 = vunpack.c.l.b16 %v366
    %v955 = vunpack.c.l.b16 %v368
    %v956 = vunpack.c.l.b16 %v371
    %v957 = vunpack.c.l.b16 %v374
    %v958 = vunpack.c.l.b16 %v376
    %v959 = vunpack.c.l.b16 %v379
    %v960 = vpack.c.b16 %v916, %v954
    %v961 = vpack.c.b16 %v918, %v917
    %v962 = vpack.c.b16 %v920, %v919
    %v963 = vpack.c.b16 %v922, %v921
    %v964 = vpack.c.b16 %v956, %v955
    %v965 = vpack.c.b16 %v926, %v957
    %v966 = vpack.c.b16 %v928, %v927
    %v967 = vpack.c.b16 %v930, %v929
    %v968 = vpack.c.b16 %v932, %v931
    %v969 = vpack.c.b16 %v959, %v958
    %v980 = vunpack.c.l.b16 %v397
    %v981 = vunpack.c.l.b16 %v402
    %v982 = vunpack.c.l.b16 %v407
    %v983 = vunpack.c.l.b16 %v412
    %v984 = vunpack.c.l.b16 %v417
    %v985 = vunpack.c.l.b16 %v422
    %v986 = vunpack.c.l.b16 %v427
    %v987 = vunpack.c.l.b16 %v432
    %v988 = vunpack.c.l.b16 %v442
    %v989 = vunpack.c.l.b16 %v452
    %v990 = vunpack.c.l.b16 %v465
    %v991 = vunpack.c.l.b16 %v470
    %v992 = vunpack.c.l.b16 %v475
    %v993 = vunpack.c.l.b16 %v480
    %v994 = vunpack.c.l.b16 %v485
    %v995 = vunpack.c.l.b16 %v490
    %v996 = vunpack.c.l.b16 %v495
    %v997 = vunpack.c.l.b16 %v500
    %v998 = vunpack.c.l.b16 %v510
    %v999 = vunpack.c.l.b16 %v520
    %v1000 = vpack.c.b16 %v981, %v980
    %v1001 = vpack.c.b16 %v983, %v982
    %v1002 = vpack.c.b16 %v985, %v984
    %v1003 = vpack.c.b16 %v987, %v986
    %v1004 = vpack.c.b16 %v989, %v988
    %v1005 = vpack.c.b16 %v991, %v990
    %v1006 = vpack.c.b16 %v993, %v992
    %v1007 = vpack.c.b16 %v995, %v994
    %v1008 = vpack.c.b16 %v997, %v996
    %v1009 = vpack.c.b16 %v999, %v998
    %v1020 = vunpack.c.l.b16 %v533
    %v1021 = vunpack.c.l.b16 %v536
    %v1022 = vunpack.c.l.b16 %v539
    %v1023 = vunpack.c.l.b16 %v542
    %v1024 = vunpack.c.l.b16 %v545
    %v1025 = vunpack.c.l.b16 %v548
    %v1026 = vunpack.c.l.b16 %v551
    %v1027 = vunpack.c.l.b16 %v554
    %v1028 = vunpack.c.l.b16 %v557
    %v1029 = vunpack.c.l.b16 %v560
    %v1030 = vunpack.c.l.b16 %v564
    %v1031 = vunpack.c.l.b16 %v567
    %v1032 = vunpack.c.l.b16 %v570
    %v1033 = vunpack.c.l.b16 %v573
    %v1034 = vunpack.c.l.b16 %v576
    %v1035 = vunpack.c.l.b16 %v579
    %v1036 = vunpack.c.l.b16 %v582
    %v1037 = vunpack.c.l.b16 %v585
    %v1038 = vunpack.c.l.b16 %v588
    %v1039 = vunpack.c.l.b16 %v591
    %v1040 = vpack.c.b16 %v1021, %v1020
    %v1041 = vpack.c.b16 %v1023, %v1022
    %v1042 = vpack.c.b16 %v1025, %v1024
    %v1043 = vpack.c.b16 %v1027, %v1026
    %v1044 = vpack.c.b16 %v1029, %v1028
    %v1045 = vpack.c.b16 %v1031, %v1030
    %v1046 = vpack.c.b16 %v1033, %v1032
    %v1047 = vpack.c.b16 %v1035, %v1034
    %v1048 = vpack.c.b16 %v1037, %v1036
    %v1049 = vpack.c.b16 %v1039, %v1038
    %v1060 = vunpack.c.l.b16 %v606
    %v1061 = vunpack.c.l.b16 %v608
    %v1062 = vunpack.c.l.b16 %v611
    %v1063 = vunpack.c.l.b16 %v614
    %v1064 = vunpack.c.l.b16 %v616
    %v1065 = vunpack.c.l.b16 %v619
    %v1066 = vpack.c.b16 %v1022, %v1060
    %v1067 = vpack.c.b16 %v1024, %v1023
    %v1068 = vpack.c.b16 %v1026, %v1025
    %v1069 = vpack.c.b16 %v1028, %v1027
    %v1070 = vpack.c.b16 %v1062, %v1061
    %v1071 = vpack.c.b16 %v1032, %v1063
    %v1072 = vpack.c.b16 %v1034, %v1033
    %v1073 = vpack.c.b16 %v1036, %v1035
    %v1074 = vpack.c.b16 %v1038, %v1037
    %v1075 = vpack.c.b16 %v1065, %v1064
    %v1086 = vunpack.c.l.b16 %v637
    %v1087 = vunpack.c.l.b16 %v642
    %v1088 = vunpack.c.l.b16 %v647
    %v1089 = vunpack.c.l.b16 %v652
    %v1090 = vunpack.c.l.b16 %v657
    %v1091 = vunpack.c.l.b16 %v662
    %v1092 = vunpack.c.l.b16 %v667
    %v1093 = vunpack.c.l.b16 %v672
    %v1094 = vunpack.c.l.b16 %v682
    %v1095 = vunpack.c.l.b16 %v692
    %v1096 = vunpack.c.l.b16 %v705
    %v1097 = vunpack.c.l.b16 %v710
    %v1098 = vunpack.c.l.b16 %v715
    %v1099 = vunpack.c.l.b16 %v720
    %v1100 = vunpack.c.l.b16 %v725
    %v1101 = vunpack.c.l.b16 %v730
    %v1102 = vunpack.c.l.b16 %v735
    %v1103 = vunpack.c.l.b16 %v740
    %v1104 = vunpack.c.l.b16 %v750
    %v1105 = vunpack.c.l.b16 %v760
    %v1106 = vpack.c.b16 %v1087, %v1086
    %v1107 = vpack.c.b16 %v1089, %v1088
    %v1108 = vpack.c.b16 %v1091, %v1090
    %v1109 = vpack.c.b16 %v1093, %v1092
    %v1110 = vpack.c.b16 %v1095, %v1094
    %v1111 = vpack.c.b16 %v1097, %v1096
    %v1112 = vpack.c.b16 %v1099, %v1098
    %v1113 = vpack.c.b16 %v1101, %v1100
    %v1114 = vpack.c.b16 %v1103, %v1102
    %v1115 = vpack.c.b16 %v1105, %v1104
    %v1126 = vunpack.c.l.b16 %v773
    %v1127 = vunpack.c.l.b16 %v776
    %v1128 = vunpack.c.l.b16 %v779
    %v1129 = vunpack.c.l.b16 %v782
    %v1130 = vunpack.c.l.b16 %v785
    %v1131 = vunpack.c.l.b16 %v788
    %v1132 = vunpack.c.l.b16 %v791
    %v1133 = vunpack.c.l.b16 %v794
    %v1134 = vunpack.c.l.b16 %v797
    %v1135 = vunpack.c.l.b16 %v800
    %v1136 = vunpack.c.l.b16 %v804
    %v1137 = vunpack.c.l.b16 %v807
    %v1138 = vunpack.c.l.b16 %v810
    %v1139 = vunpack.c.l.b16 %v813
    %v1140 = vunpack.c.l.b16 %v816
    %v1141 = vunpack.c.l.b16 %v819
    %v1142 = vunpack.c.l.b16 %v822
    %v1143 = vunpack.c.l.b16 %v825
    %v1144 = vunpack.c.l.b16 %v828
    %v1145 = vunpack.c.l.b16 %v831
    %v1146 = vpack.c.b16 %v1127, %v1126
    %v1147 = vpack.c.b16 %v1129, %v1128
    %v1148 = vpack.c.b16 %v1131, %v1130
    %v1149 = vpack.c.b16 %v1133, %v1132
    %v1150 = vpack.c.b16 %v1135, %v1134
    %v1151 = vpack.c.b16 %v1137, %v1136
    %v1152 = vpack.c.b16 %v1139, %v1138
    %v1153 = vpack.c.b16 %v1141, %v1140
    %v1154 = vpack.c.b16 %v1143, %v1142
    %v1155 = vpack.c.b16 %v1145, %v1144
    %v1166 = vld [vmem:[#allocation2] sm:$0xf]
    %v1167 = vld [vmem:[#allocation2 + $0x4] sm:$0xf]
    %v1168 = vld [vmem:[#allocation2 + $0x8] sm:$0xf]
    %v1169 = vld [vmem:[#allocation2 + $0xc] sm:$0xf]
    %v1170 = vld [vmem:[#allocation2 + $0x10] sm:$0xf]
    %v1171 = vld [vmem:[#allocation2 + $0x14] sm:$0xf]
    %v1172 = vld [vmem:[#allocation2 + $0x18] sm:$0xf]
    %v1173 = vld [vmem:[#allocation2 + $0x1c] sm:$0xf]
    %v1174 = vld [vmem:[#allocation2 + $0x20] sm:$0xf]
    %v1175 = vld [vmem:[#allocation2 + $0x24] sm:$0xf]
    %v1176 = vld [vmem:[#allocation2 + $0x28] sm:$0xf]
    %v1177 = vld [vmem:[#allocation2 + $0x2c] sm:$0xf]
    %v1178 = vld [vmem:[#allocation2 + $0x30] sm:$0xf]
    %v1179 = vld [vmem:[#allocation2 + $0x34] sm:$0xf]
    %v1180 = vld [vmem:[#allocation2 + $0x38] sm:$0xf]
    %v1181 = vld [vmem:[#allocation2 + $0x3c] sm:$0xf]
    %v1182 = vld [vmem:[#allocation2 + $0x40] sm:$0xf]
    %v1183 = vld [vmem:[#allocation2 + $0x44] sm:$0xf]
    %v1184 = vld [vmem:[#allocation2 + $0x48] sm:$0xf]
    %v1185 = vld [vmem:[#allocation2 + $0x4c] sm:$0xf]
    %v1186 = vld [vmem:[#allocation2 + $0x50] sm:$0xf]
    %v1187 = vld [vmem:[#allocation2 + $0x54] sm:$0xf]
    %v1188 = vld [vmem:[#allocation2 + $0x58] sm:$0xf]
    %v1189 = vld [vmem:[#allocation2 + $0x5c] sm:$0xf]
    %v1190 = vld [vmem:[#allocation2 + $0x60] sm:$0xf]
    %v1191 = vld [vmem:[#allocation2 + $0x64] sm:$0xf]
    %v1192 = vld [vmem:[#allocation2 + $0x68] sm:$0xf]
    %v1193 = vld [vmem:[#allocation2 + $0x6c] sm:$0xf]
    %v1194 = vld [vmem:[#allocation2 + $0x70] sm:$0xf]
    %v1195 = vld [vmem:[#allocation2 + $0x74] sm:$0xf]
    %v1196 = vld [vmem:[#allocation2 + $0x78] sm:$0xf]
    %v1197 = vld [vmem:[#allocation2 + $0x7c] sm:$0xf]
    %v1198 = vld [vmem:[#allocation2 + $0x80] sm:$0xf]
    %v1199 = vld [vmem:[#allocation2 + $0x84] sm:$0xf]
    %v1200 = vld [vmem:[#allocation2 + $0x88] sm:$0xf]
    %v1201 = vld [vmem:[#allocation2 + $0x8c] sm:$0xf]
    %v1202 = vld [vmem:[#allocation2 + $0x90] sm:$0xf]
    %v1203 = vld [vmem:[#allocation2 + $0x94] sm:$0xf]
    %v1204 = vld [vmem:[#allocation2 + $0x98] sm:$0xf]
    %v1205 = vld [vmem:[#allocation2 + $0x9c] sm:$0xf]
    %v1206 = vld [vmem:[#allocation2 + $0xa0] sm:$0xf]
    %v1207 = vld [vmem:[#allocation2 + $0xa4] sm:$0xf]
    %v1208 = vld [vmem:[#allocation2 + $0xa8] sm:$0xf]
    %v1209 = vld [vmem:[#allocation2 + $0xac] sm:$0xf]
    %v1210 = vld [vmem:[#allocation2 + $0xb0] sm:$0xf]
    %v1211 = vld [vmem:[#allocation2 + $0xb4] sm:$0xf]
    %v1212 = vld [vmem:[#allocation2 + $0xb8] sm:$0xf]
    %v1213 = vld [vmem:[#allocation2 + $0xbc] sm:$0xf]
    %v1214 = vld [vmem:[#allocation2 + $0xc0] sm:$0xf]
    %v1215 = vld [vmem:[#allocation2 + $0xc4] sm:$0xf]
    %v1216 = vld [vmem:[#allocation2 + $0xc8] sm:$0xf]
    %v1217 = vld [vmem:[#allocation2 + $0xcc] sm:$0xf]
    %v1218 = vld [vmem:[#allocation2 + $0xd0] sm:$0xf]
    %v1219 = vld [vmem:[#allocation2 + $0xd4] sm:$0xf]
    %v1220 = vld [vmem:[#allocation2 + $0xd8] sm:$0xf]
    %v1221 = vld [vmem:[#allocation2 + $0xdc] sm:$0xf]
    %v1222 = vld [vmem:[#allocation2 + $0xe0] sm:$0xf]
    %v1223 = vld [vmem:[#allocation2 + $0xe4] sm:$0xf]
    %v1224 = vld [vmem:[#allocation2 + $0xe8] sm:$0xf]
    %v1225 = vld [vmem:[#allocation2 + $0xec] sm:$0xf]
    %v1226 = vld [vmem:[#allocation2 + $0xf0] sm:$0xf]
    %v1227 = vld [vmem:[#allocation2 + $0xf4] sm:$0xf]
    %v1228 = vld [vmem:[#allocation2 + $0xf8] sm:$0xf]
    %v1229 = vld [vmem:[#allocation2 + $0xfc] sm:$0xf]
    %v1230 = vld [vmem:[#allocation2 + $0x100] sm:$0xf]
    %v1231 = vld [vmem:[#allocation2 + $0x104] sm:$0xf]
    %v1232 = vld [vmem:[#allocation2 + $0x108] sm:$0xf]
    %v1233 = vld [vmem:[#allocation2 + $0x10c] sm:$0xf]
    %v1234 = vld [vmem:[#allocation2 + $0x110] sm:$0xf]
    %v1235 = vld [vmem:[#allocation2 + $0x114] sm:$0xf]
    %v1236 = vld [vmem:[#allocation2 + $0x118] sm:$0xf]
    %v1237 = vld [vmem:[#allocation2 + $0x11c] sm:$0xf]
    %v1238 = vld [vmem:[#allocation2 + $0x120] sm:$0xf]
    %v1239 = vld [vmem:[#allocation2 + $0x124] sm:$0xf]
    %v1240 = vld [vmem:[#allocation2 + $0x128] sm:$0xf]
    %v1241 = vld [vmem:[#allocation2 + $0x12c] sm:$0xf]
    %v1242 = vld [vmem:[#allocation2 + $0x130] sm:$0xf]
    %v1243 = vld [vmem:[#allocation2 + $0x134] sm:$0xf]
    %v1244 = vld [vmem:[#allocation2 + $0x138] sm:$0xf]
    %v1245 = vld [vmem:[#allocation2 + $0x13c] sm:$0xf]
    %v1246 = vld [vmem:[#allocation2 + $0x140] sm:$0xf]
    %v1247 = vld [vmem:[#allocation2 + $0x144] sm:$0xf]
    %v1248 = vld [vmem:[#allocation2 + $0x148] sm:$0xf]
    %v1249 = vld [vmem:[#allocation2 + $0x14c] sm:$0xf]
    %v1250 = vld [vmem:[#allocation2 + $0x150] sm:$0xf]
    %v1251 = vld [vmem:[#allocation2 + $0x154] sm:$0xf]
    %v1252 = vld [vmem:[#allocation2 + $0x158] sm:$0xf]
    %v1253 = vld [vmem:[#allocation2 + $0x15c] sm:$0xf]
    %v1254 = vld [vmem:[#allocation2 + $0x160] sm:$0xf]
    %v1255 = vld [vmem:[#allocation2 + $0x164] sm:$0xf]
    %v1256 = vld [vmem:[#allocation2 + $0x168] sm:$0xf]
    %v1257 = vld [vmem:[#allocation2 + $0x16c] sm:$0xf]
    %v1258 = vld [vmem:[#allocation2 + $0x170] sm:$0xf]
    %v1259 = vld [vmem:[#allocation2 + $0x174] sm:$0xf]
    %v1260 = vld [vmem:[#allocation2 + $0x178] sm:$0xf]
    %v1261 = vld [vmem:[#allocation2 + $0x17c] sm:$0xf]
    %v1262 = vld [vmem:[#allocation2 + $0x180] sm:$0xf]
    %v1263 = vld [vmem:[#allocation2 + $0x184] sm:$0xf]
    %v1264 = vld [vmem:[#allocation2 + $0x188] sm:$0xf]
    %v1265 = vld [vmem:[#allocation2 + $0x18c] sm:$0xf]
    %v1266 = vld [vmem:[#allocation2 + $0x190] sm:$0xf]
    %v1267 = vld [vmem:[#allocation2 + $0x194] sm:$0xf]
    %v1268 = vld [vmem:[#allocation2 + $0x198] sm:$0xf]
    %v1269 = vld [vmem:[#allocation2 + $0x19c] sm:$0xf]
    %v1270 = vld [vmem:[#allocation2 + $0x1a0] sm:$0xf]
    %v1271 = vld [vmem:[#allocation2 + $0x1a4] sm:$0xf]
    %v1272 = vld [vmem:[#allocation2 + $0x1a8] sm:$0xf]
    %v1273 = vld [vmem:[#allocation2 + $0x1ac] sm:$0xf]
    %v1274 = vld [vmem:[#allocation2 + $0x1b0] sm:$0xf]
    %v1275 = vld [vmem:[#allocation2 + $0x1b4] sm:$0xf]
    %v1276 = vld [vmem:[#allocation2 + $0x1b8] sm:$0xf]
    %v1277 = vld [vmem:[#allocation2 + $0x1bc] sm:$0xf]
    %v1278 = vld [vmem:[#allocation2 + $0x1c0] sm:$0xf]
    %v1279 = vld [vmem:[#allocation2 + $0x1c4] sm:$0xf]
    %v1280 = vld [vmem:[#allocation2 + $0x1c8] sm:$0xf]
    %v1281 = vld [vmem:[#allocation2 + $0x1cc] sm:$0xf]
    %v1282 = vld [vmem:[#allocation2 + $0x1d0] sm:$0xf]
    %v1283 = vld [vmem:[#allocation2 + $0x1d4] sm:$0xf]
    %v1284 = vld [vmem:[#allocation2 + $0x1d8] sm:$0xf]
    %v1285 = vld [vmem:[#allocation2 + $0x1dc] sm:$0xf]
    %v1286 = vld [vmem:[#allocation2 + $0x1e0] sm:$0xf]
    %v1287 = vld [vmem:[#allocation2 + $0x1e4] sm:$0xf]
    %v1288 = vld [vmem:[#allocation2 + $0x1e8] sm:$0xf]
    %v1289 = vld [vmem:[#allocation2 + $0x1ec] sm:$0xf]
    %v1290 = vld [vmem:[#allocation2 + $0x1f0] sm:$0xf]
    %v1291 = vld [vmem:[#allocation2 + $0x1f4] sm:$0xf]
    %v1292 = vld [vmem:[#allocation2 + $0x1f8] sm:$0xf]
    %v1293 = vld [vmem:[#allocation2 + $0x1fc] sm:$0xf]
    %v1294 = vld [vmem:[#allocation2 + $0x200] sm:$0xf]
    %v1295 = vld [vmem:[#allocation2 + $0x204] sm:$0xf]
    %v1296 = vld [vmem:[#allocation2 + $0x208] sm:$0xf]
    %v1297 = vld [vmem:[#allocation2 + $0x20c] sm:$0xf]
    %v1298 = vld [vmem:[#allocation2 + $0x210] sm:$0xf]
    %v1299 = vld [vmem:[#allocation2 + $0x214] sm:$0xf]
    %v1300 = vld [vmem:[#allocation2 + $0x218] sm:$0xf]
    %v1301 = vld [vmem:[#allocation2 + $0x21c] sm:$0xf]
    %v1302 = vld [vmem:[#allocation2 + $0x220] sm:$0xf]
    %v1303 = vld [vmem:[#allocation2 + $0x224] sm:$0xf]
    %v1304 = vld [vmem:[#allocation2 + $0x228] sm:$0xf]
    %v1305 = vld [vmem:[#allocation2 + $0x22c] sm:$0xf]
    %v1306 = vld [vmem:[#allocation2 + $0x230] sm:$0xf]
    %v1307 = vld [vmem:[#allocation2 + $0x234] sm:$0xf]
    %v1308 = vld [vmem:[#allocation2 + $0x238] sm:$0xf]
    %v1309 = vld [vmem:[#allocation2 + $0x23c] sm:$0xf]
    %v1310 = vld [vmem:[%s2] sm:$0x1]
    %v1312 = vlaneseq
    %v1313 = vshrl.u32 %v1312, 7
    %v1314 = vsub.s32 0, %v1313
    %v1315 = vrot.slane %v1310, %v1314
    %v1461 = vunpack.c.l.b16 %v1166
    %v1462 = vunpack.c.l.b16 %v1167
    %v1463 = vunpack.c.l.b16 %v1168
    %v1464 = vunpack.c.l.b16 %v1169
    %v1465 = vunpack.c.l.b16 %v1170
    %v1466 = vunpack.c.l.b16 %v1171
    %v1467 = vunpack.c.l.b16 %v1172
    %v1468 = vunpack.c.l.b16 %v1173
    %v1469 = vunpack.c.l.b16 %v1174
    %v1470 = vunpack.c.l.b16 %v1175
    %v1471 = vunpack.c.l.b16 %v1176
    %v1472 = vunpack.c.l.b16 %v1177
    %v1473 = vunpack.c.l.b16 %v1178
    %v1474 = vunpack.c.l.b16 %v1179
    %v1475 = vunpack.c.l.b16 %v1180
    %v1476 = vunpack.c.l.b16 %v1181
    %v1477 = vunpack.c.l.b16 %v1182
    %v1478 = vunpack.c.l.b16 %v1183
    %v1479 = vunpack.c.l.b16 %v1184
    %v1480 = vunpack.c.l.b16 %v1185
    %v1481 = vunpack.c.l.b16 %v1186
    %v1482 = vunpack.c.l.b16 %v1187
    %v1483 = vunpack.c.l.b16 %v1188
    %v1484 = vunpack.c.l.b16 %v1189
    %v1485 = vunpack.c.l.b16 %v1190
    %v1486 = vunpack.c.l.b16 %v1191
    %v1487 = vunpack.c.l.b16 %v1192
    %v1488 = vunpack.c.l.b16 %v1193
    %v1489 = vunpack.c.l.b16 %v1194
    %v1490 = vunpack.c.l.b16 %v1195
    %v1491 = vunpack.c.l.b16 %v1196
    %v1492 = vunpack.c.l.b16 %v1197
    %v1493 = vunpack.c.l.b16 %v1198
    %v1494 = vunpack.c.l.b16 %v1199
    %v1495 = vunpack.c.l.b16 %v1200
    %v1496 = vunpack.c.l.b16 %v1201
    %v1497 = vunpack.c.l.b16 %v1202
    %v1498 = vunpack.c.l.b16 %v1203
    %v1499 = vunpack.c.l.b16 %v1204
    %v1500 = vunpack.c.l.b16 %v1205
    %v1501 = vunpack.c.l.b16 %v1206
    %v1502 = vunpack.c.l.b16 %v1207
    %v1503 = vunpack.c.l.b16 %v1208
    %v1504 = vunpack.c.l.b16 %v1209
    %v1505 = vunpack.c.l.b16 %v1210
    %v1506 = vunpack.c.l.b16 %v1211
    %v1507 = vunpack.c.l.b16 %v1212
    %v1508 = vunpack.c.l.b16 %v1213
    %v1509 = vunpack.c.l.b16 %v1214
    %v1510 = vunpack.c.l.b16 %v1215
    %v1511 = vunpack.c.l.b16 %v1216
    %v1512 = vunpack.c.l.b16 %v1217
    %v1513 = vunpack.c.l.b16 %v1218
    %v1514 = vunpack.c.l.b16 %v1219
    %v1515 = vunpack.c.l.b16 %v1220
    %v1516 = vunpack.c.l.b16 %v1221
    %v1517 = vunpack.c.l.b16 %v1222
    %v1518 = vunpack.c.l.b16 %v1223
    %v1519 = vunpack.c.l.b16 %v1224
    %v1520 = vunpack.c.l.b16 %v1225
    %v1521 = vunpack.c.l.b16 %v1226
    %v1522 = vunpack.c.l.b16 %v1227
    %v1523 = vunpack.c.l.b16 %v1228
    %v1524 = vunpack.c.l.b16 %v1229
    %v1525 = vunpack.c.l.b16 %v1230
    %v1526 = vunpack.c.l.b16 %v1231
    %v1527 = vunpack.c.l.b16 %v1232
    %v1528 = vunpack.c.l.b16 %v1233
    %v1529 = vunpack.c.l.b16 %v1234
    %v1530 = vunpack.c.l.b16 %v1235
    %v1531 = vunpack.c.l.b16 %v1236
    %v1532 = vunpack.c.l.b16 %v1237
    %v1533 = vunpack.c.l.b16 %v1238
    %v1534 = vunpack.c.l.b16 %v1239
    %v1535 = vunpack.c.l.b16 %v1240
    %v1536 = vunpack.c.l.b16 %v1241
    %v1537 = vunpack.c.l.b16 %v1242
    %v1538 = vunpack.c.l.b16 %v1243
    %v1539 = vunpack.c.l.b16 %v1244
    %v1540 = vunpack.c.l.b16 %v1245
    %v1541 = vunpack.c.l.b16 %v1246
    %v1542 = vunpack.c.l.b16 %v1247
    %v1543 = vunpack.c.l.b16 %v1248
    %v1544 = vunpack.c.l.b16 %v1249
    %v1545 = vunpack.c.l.b16 %v1250
    %v1546 = vunpack.c.l.b16 %v1251
    %v1547 = vunpack.c.l.b16 %v1252
    %v1548 = vunpack.c.l.b16 %v1253
    %v1549 = vunpack.c.l.b16 %v1254
    %v1550 = vunpack.c.l.b16 %v1255
    %v1551 = vunpack.c.l.b16 %v1256
    %v1552 = vunpack.c.l.b16 %v1257
    %v1553 = vunpack.c.l.b16 %v1258
    %v1554 = vunpack.c.l.b16 %v1259
    %v1555 = vunpack.c.l.b16 %v1260
    %v1556 = vunpack.c.l.b16 %v1261
    %v1557 = vunpack.c.l.b16 %v1262
    %v1558 = vunpack.c.l.b16 %v1263
    %v1559 = vunpack.c.l.b16 %v1264
    %v1560 = vunpack.c.l.b16 %v1265
    %v1561 = vunpack.c.l.b16 %v1266
    %v1562 = vunpack.c.l.b16 %v1267
    %v1563 = vunpack.c.l.b16 %v1268
    %v1564 = vunpack.c.l.b16 %v1269
    %v1565 = vunpack.c.l.b16 %v1270
    %v1566 = vunpack.c.l.b16 %v1271
    %v1567 = vunpack.c.l.b16 %v1272
    %v1568 = vunpack.c.l.b16 %v1273
    %v1569 = vunpack.c.l.b16 %v1274
    %v1570 = vunpack.c.l.b16 %v1275
    %v1571 = vunpack.c.l.b16 %v1276
    %v1572 = vunpack.c.l.b16 %v1277
    %v1573 = vunpack.c.l.b16 %v1278
    %v1574 = vunpack.c.l.b16 %v1279
    %v1575 = vunpack.c.l.b16 %v1280
    %v1576 = vunpack.c.l.b16 %v1281
    %v1577 = vunpack.c.l.b16 %v1282
    %v1578 = vunpack.c.l.b16 %v1283
    %v1579 = vunpack.c.l.b16 %v1284
    %v1580 = vunpack.c.l.b16 %v1285
    %v1581 = vunpack.c.l.b16 %v1286
    %v1582 = vunpack.c.l.b16 %v1287
    %v1583 = vunpack.c.l.b16 %v1288
    %v1584 = vunpack.c.l.b16 %v1289
    %v1585 = vunpack.c.l.b16 %v1290
    %v1586 = vunpack.c.l.b16 %v1291
    %v1587 = vunpack.c.l.b16 %v1292
    %v1588 = vunpack.c.l.b16 %v1293
    %v1589 = vunpack.c.l.b16 %v1294
    %v1590 = vunpack.c.l.b16 %v1295
    %v1591 = vunpack.c.l.b16 %v1296
    %v1592 = vunpack.c.l.b16 %v1297
    %v1593 = vunpack.c.l.b16 %v1298
    %v1594 = vunpack.c.l.b16 %v1299
    %v1595 = vunpack.c.l.b16 %v1300
    %v1596 = vunpack.c.l.b16 %v1301
    %v1597 = vunpack.c.l.b16 %v1302
    %v1598 = vunpack.c.l.b16 %v1303
    %v1599 = vunpack.c.l.b16 %v1304
    %v1600 = vunpack.c.l.b16 %v1305
    %v1601 = vunpack.c.l.b16 %v1306
    %v1602 = vunpack.c.l.b16 %v1307
    %v1603 = vunpack.c.l.b16 %v1308
    %v1604 = vunpack.c.l.b16 %v1309
    %v1605 = vpack.c.b16 %v1462, %v1461
    %v1606 = vpack.c.b16 %v1464, %v1463
    %v1607 = vpack.c.b16 %v1466, %v1465
    %v1608 = vpack.c.b16 %v1468, %v1467
    %v1609 = vpack.c.b16 %v1470, %v1469
    %v1610 = vpack.c.b16 %v1472, %v1471
    %v1611 = vpack.c.b16 %v1474, %v1473
    %v1612 = vpack.c.b16 %v1476, %v1475
    %v1613 = vpack.c.b16 %v1478, %v1477
    %v1614 = vpack.c.b16 %v1480, %v1479
    %v1615 = vpack.c.b16 %v1482, %v1481
    %v1616 = vpack.c.b16 %v1484, %v1483
    %v1617 = vpack.c.b16 %v1486, %v1485
    %v1618 = vpack.c.b16 %v1488, %v1487
    %v1619 = vpack.c.b16 %v1490, %v1489
    %v1620 = vpack.c.b16 %v1492, %v1491
    %v1621 = vpack.c.b16 %v1494, %v1493
    %v1622 = vpack.c.b16 %v1496, %v1495
    %v1623 = vpack.c.b16 %v1498, %v1497
    %v1624 = vpack.c.b16 %v1500, %v1499
    %v1625 = vpack.c.b16 %v1502, %v1501
    %v1626 = vpack.c.b16 %v1504, %v1503
    %v1627 = vpack.c.b16 %v1506, %v1505
    %v1628 = vpack.c.b16 %v1508, %v1507
    %v1629 = vpack.c.b16 %v1510, %v1509
    %v1630 = vpack.c.b16 %v1512, %v1511
    %v1631 = vpack.c.b16 %v1514, %v1513
    %v1632 = vpack.c.b16 %v1516, %v1515
    %v1633 = vpack.c.b16 %v1518, %v1517
    %v1634 = vpack.c.b16 %v1520, %v1519
    %v1635 = vpack.c.b16 %v1522, %v1521
    %v1636 = vpack.c.b16 %v1524, %v1523
    %v1637 = vpack.c.b16 %v1526, %v1525
    %v1638 = vpack.c.b16 %v1528, %v1527
    %v1639 = vpack.c.b16 %v1530, %v1529
    %v1640 = vpack.c.b16 %v1532, %v1531
    %v1641 = vpack.c.b16 %v1534, %v1533
    %v1642 = vpack.c.b16 %v1536, %v1535
    %v1643 = vpack.c.b16 %v1538, %v1537
    %v1644 = vpack.c.b16 %v1540, %v1539
    %v1645 = vpack.c.b16 %v1542, %v1541
    %v1646 = vpack.c.b16 %v1544, %v1543
    %v1647 = vpack.c.b16 %v1546, %v1545
    %v1648 = vpack.c.b16 %v1548, %v1547
    %v1649 = vpack.c.b16 %v1550, %v1549
    %v1650 = vpack.c.b16 %v1552, %v1551
    %v1651 = vpack.c.b16 %v1554, %v1553
    %v1652 = vpack.c.b16 %v1556, %v1555
    %v1653 = vpack.c.b16 %v1558, %v1557
    %v1654 = vpack.c.b16 %v1560, %v1559
    %v1655 = vpack.c.b16 %v1562, %v1561
    %v1656 = vpack.c.b16 %v1564, %v1563
    %v1657 = vpack.c.b16 %v1566, %v1565
    %v1658 = vpack.c.b16 %v1568, %v1567
    %v1659 = vpack.c.b16 %v1570, %v1569
    %v1660 = vpack.c.b16 %v1572, %v1571
    %v1661 = vpack.c.b16 %v1574, %v1573
    %v1662 = vpack.c.b16 %v1576, %v1575
    %v1663 = vpack.c.b16 %v1578, %v1577
    %v1664 = vpack.c.b16 %v1580, %v1579
    %v1665 = vpack.c.b16 %v1582, %v1581
    %v1666 = vpack.c.b16 %v1584, %v1583
    %v1667 = vpack.c.b16 %v1586, %v1585
    %v1668 = vpack.c.b16 %v1588, %v1587
    %v1669 = vpack.c.b16 %v1590, %v1589
    %v1670 = vpack.c.b16 %v1592, %v1591
    %v1671 = vpack.c.b16 %v1594, %v1593
    %v1672 = vpack.c.b16 %v1596, %v1595
    %v1673 = vpack.c.b16 %v1598, %v1597
    %v1674 = vpack.c.b16 %v1600, %v1599
    %v1675 = vpack.c.b16 %v1602, %v1601
    %v1676 = vpack.c.b16 %v1604, %v1603
    %1749 = vmatprep.subr.bf16.mxu0 0
    %1750 = vmatpush1.bf16.msra.mxu0 %v1612
    %1751 = vmatprep.subr.bf16.mxu0 0
    %1752 = vmatpush1.bf16.msra.mxu0 %v1611
    %1753 = vmatprep.subr.bf16.mxu0 0
    %1754 = vmatpush1.bf16.msra.mxu0 %v1610
    %1755 = vmatprep.subr.bf16.mxu0 0
    %1756 = vmatpush1.bf16.msra.mxu0 %v1609
    %1757 = vmatprep.subr.bf16.mxu0 0
    %1758 = vmatpush1.bf16.msra.mxu0 %v1608
    %1759 = vmatprep.subr.bf16.mxu0 0
    %1760 = vmatpush1.bf16.msra.mxu0 %v1607
    %1761 = vmatprep.subr.bf16.mxu0 0
    %1762 = vmatpush1.bf16.msra.mxu0 %v1606
    %1763 = vmatprep.subr.bf16.mxu0 0
    %1764 = vmatpush1.bf16.msra.mxu0 %v1605
    %1765 = vmatprep.subr.bf16.mxu0 0
    %1766 = vmatpush2.bf16.msra.mxu0 %v1620
    %1767 = vmatprep.subr.bf16.mxu0 0
    %1768 = vmatpush2.bf16.msra.mxu0 %v1619
    %1769 = vmatprep.subr.bf16.mxu0 0
    %1770 = vmatpush2.bf16.msra.mxu0 %v1618
    %1771 = vmatprep.subr.bf16.mxu0 0
    %1772 = vmatpush2.bf16.msra.mxu0 %v1617
    %1773 = vmatprep.subr.bf16.mxu0 0
    %1774 = vmatpush2.bf16.msra.mxu0 %v1616
    %1775 = vmatprep.subr.bf16.mxu0 0
    %1776 = vmatpush2.bf16.msra.mxu0 %v1615
    %1777 = vmatprep.subr.bf16.mxu0 0
    %1778 = vmatpush2.bf16.msra.mxu0 %v1614
    %1779 = vmatprep.subr.bf16.mxu0 0
    %1780 = vmatpush2.bf16.msra.mxu0 %v1613
    %1781 = vmatprep.mubr.bf16.mxu0 %v894
    %1782 = vmatmul.mubr.bf16.gmra.mxu0 %v854
    %v1783 = vpop.f32.mrf.mxu0
    %v1784 = vadd.f32 %v1315, %v1783
    %v1785 = vpop.f32.mrf.mxu0
    %v1786 = vpop.f32.mrf.mxu0
    %v1787 = vadd.f32 %v1315, %v1786
    %v1788 = vpop.f32.mrf.mxu0
    %1789 = vmatprep.mubr.bf16.mxu0 %v895
    %1790 = vmatmul.mubr.bf16.gmra.mxu0 %v855
    %v1791 = vpop.f32.mrf.mxu0
    %v1792 = vadd.f32 %v1315, %v1791
    %v1793 = vpop.f32.mrf.mxu0
    %v1794 = vpop.f32.mrf.mxu0
    %v1795 = vadd.f32 %v1315, %v1794
    %v1796 = vpop.f32.mrf.mxu0
    %1797 = vmatprep.mubr.bf16.mxu0 %v896
    %1798 = vmatmul.mubr.bf16.gmra.mxu0 %v856
    %v1799 = vpop.f32.mrf.mxu0
    %v1800 = vadd.f32 %v1315, %v1799
    %v1801 = vpop.f32.mrf.mxu0
    %v1802 = vpop.f32.mrf.mxu0
    %v1803 = vadd.f32 %v1315, %v1802
    %v1804 = vpop.f32.mrf.mxu0
    %1805 = vmatprep.mubr.bf16.mxu0 %v897
    %1806 = vmatmul.mubr.bf16.gmra.mxu0 %v857
    %v1807 = vpop.f32.mrf.mxu0
    %v1808 = vadd.f32 %v1315, %v1807
    %v1809 = vpop.f32.mrf.mxu0
    %v1810 = vpop.f32.mrf.mxu0
    %v1811 = vadd.f32 %v1315, %v1810
    %v1812 = vpop.f32.mrf.mxu0
    %1813 = vmatprep.mubr.bf16.mxu0 %v898
    %1814 = vmatmul.mubr.bf16.gmra.mxu0 %v858
    %v1815 = vpop.f32.mrf.mxu0
    %v1816 = vadd.f32 %v1315, %v1815
    %v1817 = vpop.f32.mrf.mxu0
    %v1818 = vpop.f32.mrf.mxu0
    %v1819 = vadd.f32 %v1315, %v1818
    %v1820 = vpop.f32.mrf.mxu0
    %1821 = vmatprep.mubr.bf16.mxu0 %v899
    %1822 = vmatmul.mubr.bf16.gmra.mxu0 %v859
    %v1823 = vpop.f32.mrf.mxu0
    %v1824 = vadd.f32 %v1315, %v1823
    %v1825 = vpop.f32.mrf.mxu0
    %v1826 = vpop.f32.mrf.mxu0
    %v1827 = vadd.f32 %v1315, %v1826
    %v1828 = vpop.f32.mrf.mxu0
    %1829 = vmatprep.mubr.bf16.mxu0 %v900
    %1830 = vmatmul.mubr.bf16.gmra.mxu0 %v860
    %v1831 = vpop.f32.mrf.mxu0
    %v1832 = vadd.f32 %v1315, %v1831
    %v1833 = vpop.f32.mrf.mxu0
    %v1834 = vpop.f32.mrf.mxu0
    %v1835 = vadd.f32 %v1315, %v1834
    %v1836 = vpop.f32.mrf.mxu0
    %1837 = vmatprep.mubr.bf16.mxu0 %v901
    %1838 = vmatmul.mubr.bf16.gmra.mxu0 %v861
    %v1839 = vpop.f32.mrf.mxu0
    %v1840 = vadd.f32 %v1315, %v1839
    %v1841 = vpop.f32.mrf.mxu0
    %v1842 = vpop.f32.mrf.mxu0
    %v1843 = vadd.f32 %v1315, %v1842
    %v1844 = vpop.f32.mrf.mxu0
    %1845 = vmatprep.mubr.bf16.mxu0 %v902
    %1846 = vmatmul.mubr.bf16.gmra.mxu0 %v862
    %v1847 = vpop.f32.mrf.mxu0
    %v1848 = vadd.f32 %v1315, %v1847
    %v1849 = vpop.f32.mrf.mxu0
    %v1850 = vpop.f32.mrf.mxu0
    %v1851 = vadd.f32 %v1315, %v1850
    %v1852 = vpop.f32.mrf.mxu0
    %1853 = vmatprep.mubr.bf16.mxu0 %v903
    %1854 = vmatmul.mubr.bf16.gmra.mxu0 %v863
    %v1855 = vpop.f32.mrf.mxu0
    %v1856 = vadd.f32 %v1315, %v1855
    %v1857 = vpop.f32.mrf.mxu0
    %v1858 = vpop.f32.mrf.mxu0
    %v1859 = vadd.f32 %v1315, %v1858
    %v1860 = vpop.f32.mrf.mxu0
    %1861 = vdwg.mxu0
    %1862 = vmatprep.subr.bf16.mxu0 0
    %1863 = vmatpush1.bf16.msra.mxu0 %v1628
    %1864 = vmatprep.subr.bf16.mxu0 0
    %1865 = vmatpush1.bf16.msra.mxu0 %v1627
    %1866 = vmatprep.subr.bf16.mxu0 0
    %1867 = vmatpush1.bf16.msra.mxu0 %v1626
    %1868 = vmatprep.subr.bf16.mxu0 0
    %1869 = vmatpush1.bf16.msra.mxu0 %v1625
    %1870 = vmatprep.subr.bf16.mxu0 0
    %1871 = vmatpush1.bf16.msra.mxu0 %v1624
    %1872 = vmatprep.subr.bf16.mxu0 0
    %1873 = vmatpush1.bf16.msra.mxu0 %v1623
    %1874 = vmatprep.subr.bf16.mxu0 0
    %1875 = vmatpush1.bf16.msra.mxu0 %v1622
    %1876 = vmatprep.subr.bf16.mxu0 0
    %1877 = vmatpush1.bf16.msra.mxu0 %v1621
    %1878 = vmatprep.subr.bf16.mxu0 0
    %1879 = vmatpush2.bf16.msra.mxu0 %v1636
    %1880 = vmatprep.subr.bf16.mxu0 0
    %1881 = vmatpush2.bf16.msra.mxu0 %v1635
    %1882 = vmatprep.subr.bf16.mxu0 0
    %1883 = vmatpush2.bf16.msra.mxu0 %v1634
    %1884 = vmatprep.subr.bf16.mxu0 0
    %1885 = vmatpush2.bf16.msra.mxu0 %v1633
    %1886 = vmatprep.subr.bf16.mxu0 0
    %1887 = vmatpush2.bf16.msra.mxu0 %v1632
    %1888 = vmatprep.subr.bf16.mxu0 0
    %1889 = vmatpush2.bf16.msra.mxu0 %v1631
    %1890 = vmatprep.subr.bf16.mxu0 0
    %1891 = vmatpush2.bf16.msra.mxu0 %v1630
    %1892 = vmatprep.subr.bf16.mxu0 0
    %1893 = vmatpush2.bf16.msra.mxu0 %v1629
    %1894 = vmatprep.mubr.bf16.mxu0 %v960
    %1895 = vmatmul.mubr.bf16.gmra.mxu0 %v934
    %v1896 = vpop.f32.mrf.mxu0
    %v1897 = vadd.f32 %v1784, %v1896
    %v1898 = vpop.f32.mrf.mxu0
    %v1899 = vpop.f32.mrf.mxu0
    %v1900 = vadd.f32 %v1787, %v1899
    %v1901 = vpop.f32.mrf.mxu0
    %1902 = vmatprep.mubr.bf16.mxu0 %v961
    %1903 = vmatmul.mubr.bf16.gmra.mxu0 %v935
    %v1904 = vpop.f32.mrf.mxu0
    %v1905 = vadd.f32 %v1792, %v1904
    %v1906 = vpop.f32.mrf.mxu0
    %v1907 = vpop.f32.mrf.mxu0
    %v1908 = vadd.f32 %v1795, %v1907
    %v1909 = vpop.f32.mrf.mxu0
    %1910 = vmatprep.mubr.bf16.mxu0 %v962
    %1911 = vmatmul.mubr.bf16.gmra.mxu0 %v936
    %v1912 = vpop.f32.mrf.mxu0
    %v1913 = vadd.f32 %v1800, %v1912
    %v1914 = vpop.f32.mrf.mxu0
    %v1915 = vpop.f32.mrf.mxu0
    %v1916 = vadd.f32 %v1803, %v1915
    %v1917 = vpop.f32.mrf.mxu0
    %1918 = vmatprep.mubr.bf16.mxu0 %v963
    %1919 = vmatmul.mubr.bf16.gmra.mxu0 %v937
    %v1920 = vpop.f32.mrf.mxu0
    %v1921 = vadd.f32 %v1808, %v1920
    %v1922 = vpop.f32.mrf.mxu0
    %v1923 = vpop.f32.mrf.mxu0
    %v1924 = vadd.f32 %v1811, %v1923
    %v1925 = vpop.f32.mrf.mxu0
    %1926 = vmatprep.mubr.bf16.mxu0 %v964
    %1927 = vmatmul.mubr.bf16.gmra.mxu0 %v938
    %v1928 = vpop.f32.mrf.mxu0
    %v1929 = vadd.f32 %v1816, %v1928
    %v1930 = vpop.f32.mrf.mxu0
    %v1931 = vpop.f32.mrf.mxu0
    %v1932 = vadd.f32 %v1819, %v1931
    %v1933 = vpop.f32.mrf.mxu0
    %1934 = vmatprep.mubr.bf16.mxu0 %v965
    %1935 = vmatmul.mubr.bf16.gmra.mxu0 %v939
    %v1936 = vpop.f32.mrf.mxu0
    %v1937 = vadd.f32 %v1824, %v1936
    %v1938 = vpop.f32.mrf.mxu0
    %v1939 = vpop.f32.mrf.mxu0
    %v1940 = vadd.f32 %v1827, %v1939
    %v1941 = vpop.f32.mrf.mxu0
    %1942 = vmatprep.mubr.bf16.mxu0 %v966
    %1943 = vmatmul.mubr.bf16.gmra.mxu0 %v940
    %v1944 = vpop.f32.mrf.mxu0
    %v1945 = vadd.f32 %v1832, %v1944
    %v1946 = vpop.f32.mrf.mxu0
    %v1947 = vpop.f32.mrf.mxu0
    %v1948 = vadd.f32 %v1835, %v1947
    %v1949 = vpop.f32.mrf.mxu0
    %1950 = vmatprep.mubr.bf16.mxu0 %v967
    %1951 = vmatmul.mubr.bf16.gmra.mxu0 %v941
    %v1952 = vpop.f32.mrf.mxu0
    %v1953 = vadd.f32 %v1840, %v1952
    %v1954 = vpop.f32.mrf.mxu0
    %v1955 = vpop.f32.mrf.mxu0
    %v1956 = vadd.f32 %v1843, %v1955
    %v1957 = vpop.f32.mrf.mxu0
    %1958 = vmatprep.mubr.bf16.mxu0 %v968
    %1959 = vmatmul.mubr.bf16.gmra.mxu0 %v942
    %v1960 = vpop.f32.mrf.mxu0
    %v1961 = vadd.f32 %v1848, %v1960
    %v1962 = vpop.f32.mrf.mxu0
    %v1963 = vpop.f32.mrf.mxu0
    %v1964 = vadd.f32 %v1851, %v1963
    %v1965 = vpop.f32.mrf.mxu0
    %1966 = vmatprep.mubr.bf16.mxu0 %v969
    %1967 = vmatmul.mubr.bf16.gmra.mxu0 %v943
    %v1968 = vpop.f32.mrf.mxu0
    %v1969 = vadd.f32 %v1856, %v1968
    %v1970 = vpop.f32.mrf.mxu0
    %v1971 = vpop.f32.mrf.mxu0
    %v1972 = vadd.f32 %v1859, %v1971
    %v1973 = vpop.f32.mrf.mxu0
    %1974 = vdwg.mxu0
    %1975 = vmatprep.subr.bf16.mxu0 0
    %1976 = vmatpush1.bf16.msra.mxu0 %v1644
    %1977 = vmatprep.subr.bf16.mxu0 0
    %1978 = vmatpush1.bf16.msra.mxu0 %v1643
    %1979 = vmatprep.subr.bf16.mxu0 0
    %1980 = vmatpush1.bf16.msra.mxu0 %v1642
    %1981 = vmatprep.subr.bf16.mxu0 0
    %1982 = vmatpush1.bf16.msra.mxu0 %v1641
    %1983 = vmatprep.subr.bf16.mxu0 0
    %1984 = vmatpush1.bf16.msra.mxu0 %v1640
    %1985 = vmatprep.subr.bf16.mxu0 0
    %1986 = vmatpush1.bf16.msra.mxu0 %v1639
    %1987 = vmatprep.subr.bf16.mxu0 0
    %1988 = vmatpush1.bf16.msra.mxu0 %v1638
    %1989 = vmatprep.subr.bf16.mxu0 0
    %1990 = vmatpush1.bf16.msra.mxu0 %v1637
    %1991 = vmatprep.subr.bf16.mxu0 0
    %1992 = vmatpush2.bf16.msra.mxu0 %v1652
    %1993 = vmatprep.subr.bf16.mxu0 0
    %1994 = vmatpush2.bf16.msra.mxu0 %v1651
    %1995 = vmatprep.subr.bf16.mxu0 0
    %1996 = vmatpush2.bf16.msra.mxu0 %v1650
    %1997 = vmatprep.subr.bf16.mxu0 0
    %1998 = vmatpush2.bf16.msra.mxu0 %v1649
    %1999 = vmatprep.subr.bf16.mxu0 0
    %2000 = vmatpush2.bf16.msra.mxu0 %v1648
    %2001 = vmatprep.subr.bf16.mxu0 0
    %2002 = vmatpush2.bf16.msra.mxu0 %v1647
    %2003 = vmatprep.subr.bf16.mxu0 0
    %2004 = vmatpush2.bf16.msra.mxu0 %v1646
    %2005 = vmatprep.subr.bf16.mxu0 0
    %2006 = vmatpush2.bf16.msra.mxu0 %v1645
    %2007 = vmatprep.mubr.bf16.mxu0 %v1040
    %2008 = vmatmul.mubr.bf16.gmra.mxu0 %v1000
    %v2009 = vpop.f32.mrf.mxu0
    %v2010 = vadd.f32 %v1897, %v2009
    %v2011 = vpop.f32.mrf.mxu0
    %v2012 = vpop.f32.mrf.mxu0
    %v2013 = vadd.f32 %v1900, %v2012
    %v2014 = vpop.f32.mrf.mxu0
    %2015 = vmatprep.mubr.bf16.mxu0 %v1041
    %2016 = vmatmul.mubr.bf16.gmra.mxu0 %v1001
    %v2017 = vpop.f32.mrf.mxu0
    %v2018 = vadd.f32 %v1905, %v2017
    %v2019 = vpop.f32.mrf.mxu0
    %v2020 = vpop.f32.mrf.mxu0
    %v2021 = vadd.f32 %v1908, %v2020
    %v2022 = vpop.f32.mrf.mxu0
    %2023 = vmatprep.mubr.bf16.mxu0 %v1042
    %2024 = vmatmul.mubr.bf16.gmra.mxu0 %v1002
    %v2025 = vpop.f32.mrf.mxu0
    %v2026 = vadd.f32 %v1913, %v2025
    %v2027 = vpop.f32.mrf.mxu0
    %v2028 = vpop.f32.mrf.mxu0
    %v2029 = vadd.f32 %v1916, %v2028
    %v2030 = vpop.f32.mrf.mxu0
    %2031 = vmatprep.mubr.bf16.mxu0 %v1043
    %2032 = vmatmul.mubr.bf16.gmra.mxu0 %v1003
    %v2033 = vpop.f32.mrf.mxu0
    %v2034 = vadd.f32 %v1921, %v2033
    %v2035 = vpop.f32.mrf.mxu0
    %v2036 = vpop.f32.mrf.mxu0
    %v2037 = vadd.f32 %v1924, %v2036
    %v2038 = vpop.f32.mrf.mxu0
    %2039 = vmatprep.mubr.bf16.mxu0 %v1044
    %2040 = vmatmul.mubr.bf16.gmra.mxu0 %v1004
    %v2041 = vpop.f32.mrf.mxu0
    %v2042 = vadd.f32 %v1929, %v2041
    %v2043 = vpop.f32.mrf.mxu0
    %v2044 = vpop.f32.mrf.mxu0
    %v2045 = vadd.f32 %v1932, %v2044
    %v2046 = vpop.f32.mrf.mxu0
    %2047 = vmatprep.mubr.bf16.mxu0 %v1045
    %2048 = vmatmul.mubr.bf16.gmra.mxu0 %v1005
    %v2049 = vpop.f32.mrf.mxu0
    %v2050 = vadd.f32 %v1937, %v2049
    %v2051 = vpop.f32.mrf.mxu0
    %v2052 = vpop.f32.mrf.mxu0
    %v2053 = vadd.f32 %v1940, %v2052
    %v2054 = vpop.f32.mrf.mxu0
    %2055 = vmatprep.mubr.bf16.mxu0 %v1046
    %2056 = vmatmul.mubr.bf16.gmra.mxu0 %v1006
    %v2057 = vpop.f32.mrf.mxu0
    %v2058 = vadd.f32 %v1945, %v2057
    %v2059 = vpop.f32.mrf.mxu0
    %v2060 = vpop.f32.mrf.mxu0
    %v2061 = vadd.f32 %v1948, %v2060
    %v2062 = vpop.f32.mrf.mxu0
    %2063 = vmatprep.mubr.bf16.mxu0 %v1047
    %2064 = vmatmul.mubr.bf16.gmra.mxu0 %v1007
    %v2065 = vpop.f32.mrf.mxu0
    %v2066 = vadd.f32 %v1953, %v2065
    %v2067 = vpop.f32.mrf.mxu0
    %v2068 = vpop.f32.mrf.mxu0
    %v2069 = vadd.f32 %v1956, %v2068
    %v2070 = vpop.f32.mrf.mxu0
    %2071 = vmatprep.mubr.bf16.mxu0 %v1048
    %2072 = vmatmul.mubr.bf16.gmra.mxu0 %v1008
    %v2073 = vpop.f32.mrf.mxu0
    %v2074 = vadd.f32 %v1961, %v2073
    %v2075 = vpop.f32.mrf.mxu0
    %v2076 = vpop.f32.mrf.mxu0
    %v2077 = vadd.f32 %v1964, %v2076
    %v2078 = vpop.f32.mrf.mxu0
    %2079 = vmatprep.mubr.bf16.mxu0 %v1049
    %2080 = vmatmul.mubr.bf16.gmra.mxu0 %v1009
    %v2081 = vpop.f32.mrf.mxu0
    %v2082 = vadd.f32 %v1969, %v2081
    %v2083 = vpop.f32.mrf.mxu0
    %v2084 = vpop.f32.mrf.mxu0
    %v2085 = vadd.f32 %v1972, %v2084
    %v2086 = vpop.f32.mrf.mxu0
    %2087 = vdwg.mxu0
    %2088 = vmatprep.subr.bf16.mxu0 0
    %2089 = vmatpush1.bf16.msra.mxu0 %v1660
    %2090 = vmatprep.subr.bf16.mxu0 0
    %2091 = vmatpush1.bf16.msra.mxu0 %v1659
    %2092 = vmatprep.subr.bf16.mxu0 0
    %2093 = vmatpush1.bf16.msra.mxu0 %v1658
    %2094 = vmatprep.subr.bf16.mxu0 0
    %2095 = vmatpush1.bf16.msra.mxu0 %v1657
    %2096 = vmatprep.subr.bf16.mxu0 0
    %2097 = vmatpush1.bf16.msra.mxu0 %v1656
    %2098 = vmatprep.subr.bf16.mxu0 0
    %2099 = vmatpush1.bf16.msra.mxu0 %v1655
    %2100 = vmatprep.subr.bf16.mxu0 0
    %2101 = vmatpush1.bf16.msra.mxu0 %v1654
    %2102 = vmatprep.subr.bf16.mxu0 0
    %2103 = vmatpush1.bf16.msra.mxu0 %v1653
    %2104 = vmatprep.subr.bf16.mxu0 0
    %2105 = vmatpush2.bf16.msra.mxu0 %v1668
    %2106 = vmatprep.subr.bf16.mxu0 0
    %2107 = vmatpush2.bf16.msra.mxu0 %v1667
    %2108 = vmatprep.subr.bf16.mxu0 0
    %2109 = vmatpush2.bf16.msra.mxu0 %v1666
    %2110 = vmatprep.subr.bf16.mxu0 0
    %2111 = vmatpush2.bf16.msra.mxu0 %v1665
    %2112 = vmatprep.subr.bf16.mxu0 0
    %2113 = vmatpush2.bf16.msra.mxu0 %v1664
    %2114 = vmatprep.subr.bf16.mxu0 0
    %2115 = vmatpush2.bf16.msra.mxu0 %v1663
    %2116 = vmatprep.subr.bf16.mxu0 0
    %2117 = vmatpush2.bf16.msra.mxu0 %v1662
    %2118 = vmatprep.subr.bf16.mxu0 0
    %2119 = vmatpush2.bf16.msra.mxu0 %v1661
    %2120 = vmatprep.mubr.bf16.mxu0 %v1106
    %2121 = vmatmul.mubr.bf16.gmra.mxu0 %v1066
    %v2122 = vpop.f32.mrf.mxu0
    %v2123 = vadd.f32 %v2010, %v2122
    %v2124 = vpop.f32.mrf.mxu0
    %v2125 = vpop.f32.mrf.mxu0
    %v2126 = vadd.f32 %v2013, %v2125
    %v2127 = vpop.f32.mrf.mxu0
    %2128 = vmatprep.mubr.bf16.mxu0 %v1107
    %2129 = vmatmul.mubr.bf16.gmra.mxu0 %v1067
    %v2130 = vpop.f32.mrf.mxu0
    %v2131 = vadd.f32 %v2018, %v2130
    %v2132 = vpop.f32.mrf.mxu0
    %v2133 = vpop.f32.mrf.mxu0
    %v2134 = vadd.f32 %v2021, %v2133
    %v2135 = vpop.f32.mrf.mxu0
    %2136 = vmatprep.mubr.bf16.mxu0 %v1108
    %2137 = vmatmul.mubr.bf16.gmra.mxu0 %v1068
    %v2138 = vpop.f32.mrf.mxu0
    %v2139 = vadd.f32 %v2026, %v2138
    %v2140 = vpop.f32.mrf.mxu0
    %v2141 = vpop.f32.mrf.mxu0
    %v2142 = vadd.f32 %v2029, %v2141
    %v2143 = vpop.f32.mrf.mxu0
    %2144 = vmatprep.mubr.bf16.mxu0 %v1109
    %2145 = vmatmul.mubr.bf16.gmra.mxu0 %v1069
    %v2146 = vpop.f32.mrf.mxu0
    %v2147 = vadd.f32 %v2034, %v2146
    %v2148 = vpop.f32.mrf.mxu0
    %v2149 = vpop.f32.mrf.mxu0
    %v2150 = vadd.f32 %v2037, %v2149
    %v2151 = vpop.f32.mrf.mxu0
    %2152 = vmatprep.mubr.bf16.mxu0 %v1110
    %2153 = vmatmul.mubr.bf16.gmra.mxu0 %v1070
    %v2154 = vpop.f32.mrf.mxu0
    %v2155 = vadd.f32 %v2042, %v2154
    %v2156 = vpop.f32.mrf.mxu0
    %v2157 = vpop.f32.mrf.mxu0
    %v2158 = vadd.f32 %v2045, %v2157
    %v2159 = vpop.f32.mrf.mxu0
    %2160 = vmatprep.mubr.bf16.mxu0 %v1111
    %2161 = vmatmul.mubr.bf16.gmra.mxu0 %v1071
    %v2162 = vpop.f32.mrf.mxu0
    %v2163 = vadd.f32 %v2050, %v2162
    %v2164 = vpop.f32.mrf.mxu0
    %v2165 = vpop.f32.mrf.mxu0
    %v2166 = vadd.f32 %v2053, %v2165
    %v2167 = vpop.f32.mrf.mxu0
    %2168 = vmatprep.mubr.bf16.mxu0 %v1112
    %2169 = vmatmul.mubr.bf16.gmra.mxu0 %v1072
    %v2170 = vpop.f32.mrf.mxu0
    %v2171 = vadd.f32 %v2058, %v2170
    %v2172 = vpop.f32.mrf.mxu0
    %v2173 = vpop.f32.mrf.mxu0
    %v2174 = vadd.f32 %v2061, %v2173
    %v2175 = vpop.f32.mrf.mxu0
    %2176 = vmatprep.mubr.bf16.mxu0 %v1113
    %2177 = vmatmul.mubr.bf16.gmra.mxu0 %v1073
    %v2178 = vpop.f32.mrf.mxu0
    %v2179 = vadd.f32 %v2066, %v2178
    %v2180 = vpop.f32.mrf.mxu0
    %v2181 = vpop.f32.mrf.mxu0
    %v2182 = vadd.f32 %v2069, %v2181
    %v2183 = vpop.f32.mrf.mxu0
    %2184 = vmatprep.mubr.bf16.mxu0 %v1114
    %2185 = vmatmul.mubr.bf16.gmra.mxu0 %v1074
    %v2186 = vpop.f32.mrf.mxu0
    %v2187 = vadd.f32 %v2074, %v2186
    %v2188 = vpop.f32.mrf.mxu0
    %v2189 = vpop.f32.mrf.mxu0
    %v2190 = vadd.f32 %v2077, %v2189
    %v2191 = vpop.f32.mrf.mxu0
    %2192 = vmatprep.mubr.bf16.mxu0 %v1115
    %2193 = vmatmul.mubr.bf16.gmra.mxu0 %v1075
    %v2194 = vpop.f32.mrf.mxu0
    %v2195 = vadd.f32 %v2082, %v2194
    %v2196 = vpop.f32.mrf.mxu0
    %v2197 = vpop.f32.mrf.mxu0
    %v2198 = vadd.f32 %v2085, %v2197
    %v2199 = vpop.f32.mrf.mxu0
    %2200 = vdwg.mxu0
    %2201 = vmatprep.subr.bf16.mxu0 0
    %2202 = vmatpush1.bf16.msra.mxu0 %v1676
    %2203 = vmatprep.subr.bf16.mxu0 0
    %2204 = vmatpush1.bf16.msra.mxu0 %v1675
    %2205 = vmatprep.subr.bf16.mxu0 0
    %2206 = vmatpush1.bf16.msra.mxu0 %v1674
    %2207 = vmatprep.subr.bf16.mxu0 0
    %2208 = vmatpush1.bf16.msra.mxu0 %v1673
    %2209 = vmatprep.subr.bf16.mxu0 0
    %2210 = vmatpush1.bf16.msra.mxu0 %v1672
    %2211 = vmatprep.subr.bf16.mxu0 0
    %2212 = vmatpush1.bf16.msra.mxu0 %v1671
    %2213 = vmatprep.subr.bf16.mxu0 0
    %2214 = vmatpush1.bf16.msra.mxu0 %v1670
    %2215 = vmatprep.subr.bf16.mxu0 0
    %2216 = vmatpush1.bf16.msra.mxu0 %v1669
    %2217 = vmatprep.subr.bf16.mxu0 0
    %2218 = vmatpush2.bf16.msra.mxu0 0
    %2219 = vmatprep.subr.bf16.mxu0 0
    %2220 = vmatpush2.bf16.msra.mxu0 0
    %2221 = vmatprep.subr.bf16.mxu0 0
    %2222 = vmatpush2.bf16.msra.mxu0 0
    %2223 = vmatprep.subr.bf16.mxu0 0
    %2224 = vmatpush2.bf16.msra.mxu0 0
    %2225 = vmatprep.subr.bf16.mxu0 0
    %2226 = vmatpush2.bf16.msra.mxu0 0
    %2227 = vmatprep.subr.bf16.mxu0 0
    %2228 = vmatpush2.bf16.msra.mxu0 0
    %2229 = vmatprep.subr.bf16.mxu0 0
    %2230 = vmatpush2.bf16.msra.mxu0 0
    %2231 = vmatprep.subr.bf16.mxu0 0
    %2232 = vmatpush2.bf16.msra.mxu0 0
    %2233 = vmatprep.mubr.bf16.mxu0 0
    %2234 = vmatmul.mubr.bf16.gmra.mxu0 %v1146
    %v2235 = vpop.f32.mrf.mxu0
    %v2236 = vadd.f32 %v2123, %v2235
    %v2237 = vpop.f32.mrf.mxu0
    %v2238 = vpop.f32.mrf.mxu0
    %v2239 = vadd.f32 %v2126, %v2238
    %v2240 = vpop.f32.mrf.mxu0
    %2241 = vmatprep.mubr.bf16.mxu0 0
    %2242 = vmatmul.mubr.bf16.gmra.mxu0 %v1147
    %v2243 = vpop.f32.mrf.mxu0
    %v2244 = vadd.f32 %v2131, %v2243
    %v2245 = vpop.f32.mrf.mxu0
    %v2246 = vpop.f32.mrf.mxu0
    %v2247 = vadd.f32 %v2134, %v2246
    %v2248 = vpop.f32.mrf.mxu0
    %2249 = vmatprep.mubr.bf16.mxu0 0
    %2250 = vmatmul.mubr.bf16.gmra.mxu0 %v1148
    %v2251 = vpop.f32.mrf.mxu0
    %v2252 = vadd.f32 %v2139, %v2251
    %v2253 = vpop.f32.mrf.mxu0
    %v2254 = vpop.f32.mrf.mxu0
    %v2255 = vadd.f32 %v2142, %v2254
    %v2256 = vpop.f32.mrf.mxu0
    %2257 = vmatprep.mubr.bf16.mxu0 0
    %2258 = vmatmul.mubr.bf16.gmra.mxu0 %v1149
    %v2259 = vpop.f32.mrf.mxu0
    %v2260 = vadd.f32 %v2147, %v2259
    %v2261 = vpop.f32.mrf.mxu0
    %v2262 = vpop.f32.mrf.mxu0
    %v2263 = vadd.f32 %v2150, %v2262
    %v2264 = vpop.f32.mrf.mxu0
    %2265 = vmatprep.mubr.bf16.mxu0 0
    %2266 = vmatmul.mubr.bf16.gmra.mxu0 %v1150
    %v2267 = vpop.f32.mrf.mxu0
    %v2268 = vadd.f32 %v2155, %v2267
    %v2269 = vpop.f32.mrf.mxu0
    %v2270 = vpop.f32.mrf.mxu0
    %v2271 = vadd.f32 %v2158, %v2270
    %v2272 = vpop.f32.mrf.mxu0
    %2273 = vmatprep.mubr.bf16.mxu0 0
    %2274 = vmatmul.mubr.bf16.gmra.mxu0 %v1151
    %v2275 = vpop.f32.mrf.mxu0
    %v2276 = vadd.f32 %v2163, %v2275
    %v2277 = vpop.f32.mrf.mxu0
    %v2278 = vpop.f32.mrf.mxu0
    %v2279 = vadd.f32 %v2166, %v2278
    %v2280 = vpop.f32.mrf.mxu0
    %2281 = vmatprep.mubr.bf16.mxu0 0
    %2282 = vmatmul.mubr.bf16.gmra.mxu0 %v1152
    %v2283 = vpop.f32.mrf.mxu0
    %v2284 = vadd.f32 %v2171, %v2283
    %v2285 = vpop.f32.mrf.mxu0
    %v2286 = vpop.f32.mrf.mxu0
    %v2287 = vadd.f32 %v2174, %v2286
    %v2288 = vpop.f32.mrf.mxu0
    %2289 = vmatprep.mubr.bf16.mxu0 0
    %2290 = vmatmul.mubr.bf16.gmra.mxu0 %v1153
    %v2291 = vpop.f32.mrf.mxu0
    %v2292 = vadd.f32 %v2179, %v2291
    %v2293 = vpop.f32.mrf.mxu0
    %v2294 = vpop.f32.mrf.mxu0
    %v2295 = vadd.f32 %v2182, %v2294
    %v2296 = vpop.f32.mrf.mxu0
    %2297 = vmatprep.mubr.bf16.mxu0 0
    %2298 = vmatmul.mubr.bf16.gmra.mxu0 %v1154
    %v2299 = vpop.f32.mrf.mxu0
    %v2300 = vadd.f32 %v2187, %v2299
    %v2301 = vpop.f32.mrf.mxu0
    %v2302 = vpop.f32.mrf.mxu0
    %v2303 = vadd.f32 %v2190, %v2302
    %v2304 = vpop.f32.mrf.mxu0
    %2305 = vmatprep.mubr.bf16.mxu0 0
    %2306 = vmatmul.mubr.bf16.gmra.mxu0 %v1155
    %v2307 = vpop.f32.mrf.mxu0
    %v2308 = vadd.f32 %v2195, %v2307
    %v2309 = vpop.f32.mrf.mxu0
    %v2310 = vpop.f32.mrf.mxu0
    %v2311 = vadd.f32 %v2198, %v2310
    %v2312 = vpop.f32.mrf.mxu0
    %2313 = vdwg.mxu0
    %v2314 = vmax.f32 %v2236, 0.0
    %v2315 = vmax.f32 %v2239, 0.0
    %v2316 = vmax.f32 %v2244, 0.0
    %v2317 = vmax.f32 %v2247, 0.0
    %v2318 = vmax.f32 %v2252, 0.0
    %v2319 = vmax.f32 %v2255, 0.0
    %v2320 = vmax.f32 %v2260, 0.0
    %v2321 = vmax.f32 %v2263, 0.0
    %v2322 = vmax.f32 %v2268, 0.0
    %v2323 = vmax.f32 %v2271, 0.0
    %v2324 = vmax.f32 %v2276, 0.0
    %v2325 = vmax.f32 %v2279, 0.0
    %v2326 = vmax.f32 %v2284, 0.0
    %v2327 = vmax.f32 %v2287, 0.0
    %v2328 = vmax.f32 %v2292, 0.0
    %v2329 = vmax.f32 %v2295, 0.0
    %v2330 = vmax.f32 %v2300, 0.0
    %v2331 = vmax.f32 %v2303, 0.0
    %v2332 = vmax.f32 %v2308, 0.0
    %v2333 = vmax.f32 %v2311, 0.0
    %v2334 = vpack.c.bf16 %v2315, %v2314
    %v2335 = vpack.c.bf16 %v2317, %v2316
    %v2336 = vpack.c.bf16 %v2319, %v2318
    %v2337 = vpack.c.bf16 %v2321, %v2320
    %v2338 = vpack.c.bf16 %v2323, %v2322
    %v2339 = vpack.c.bf16 %v2325, %v2324
    %v2340 = vpack.c.bf16 %v2327, %v2326
    %v2341 = vpack.c.bf16 %v2329, %v2328
    %v2342 = vpack.c.bf16 %v2331, %v2330
    %v2343 = vpack.c.bf16 %v2333, %v2332
    %v2354 = vunpack.c.l.b16 %v2334
    %v2355 = vunpack.c.h.b16 %v2334
    %v2356 = vunpack.c.l.b16 %v2335
    %v2357 = vunpack.c.h.b16 %v2335
    %v2358 = vunpack.c.l.b16 %v2336
    %v2359 = vunpack.c.h.b16 %v2336
    %v2360 = vunpack.c.l.b16 %v2337
    %v2361 = vunpack.c.h.b16 %v2337
    %v2362 = vunpack.c.l.b16 %v2338
    %v2363 = vunpack.c.h.b16 %v2338
    %v2364 = vunpack.c.l.b16 %v2339
    %v2365 = vunpack.c.h.b16 %v2339
    %v2366 = vunpack.c.l.b16 %v2340
    %v2367 = vunpack.c.h.b16 %v2340
    %v2368 = vunpack.c.l.b16 %v2341
    %v2369 = vunpack.c.h.b16 %v2341
    %v2370 = vunpack.c.l.b16 %v2342
    %v2371 = vunpack.c.h.b16 %v2342
    %v2372 = vunpack.c.l.b16 %v2343
    %v2373 = vunpack.c.h.b16 %v2343
    %v2374 = vpack.c.b16 %v2354, %v2354
    %v2375 = vpack.c.b16 %v2355, %v2355
    %v2376 = vpack.c.b16 %v2356, %v2356
    %v2377 = vpack.c.b16 %v2357, %v2357
    %v2378 = vpack.c.b16 %v2358, %v2358
    %v2379 = vpack.c.b16 %v2359, %v2359
    %v2380 = vpack.c.b16 %v2360, %v2360
    %v2381 = vpack.c.b16 %v2361, %v2361
    %v2382 = vpack.c.b16 %v2362, %v2362
    %v2383 = vpack.c.b16 %v2363, %v2363
    %v2384 = vpack.c.b16 %v2364, %v2364
    %v2385 = vpack.c.b16 %v2365, %v2365
    %v2386 = vpack.c.b16 %v2366, %v2366
    %v2387 = vpack.c.b16 %v2367, %v2367
    %v2388 = vpack.c.b16 %v2368, %v2368
    %v2389 = vpack.c.b16 %v2369, %v2369
    %v2390 = vpack.c.b16 %v2370, %v2370
    %v2391 = vpack.c.b16 %v2371, %v2371
    %v2392 = vpack.c.b16 %v2372, %v2372
    %v2393 = vpack.c.b16 %v2373, %v2373
    %2414 = vst [vmem:[#allocation5] sm:$0xf] %v2374
    %2415 = vst [vmem:[#allocation5 + $0x4] sm:$0xf] %v2375
    %2416 = vst [vmem:[#allocation5 + $0x8] sm:$0xf] %v2376
    %2417 = vst [vmem:[#allocation5 + $0xc] sm:$0xf] %v2377
    %2418 = vst [vmem:[#allocation5 + $0x10] sm:$0xf] %v2378
    %2419 = vst [vmem:[#allocation5 + $0x14] sm:$0xf] %v2379
    %2420 = vst [vmem:[#allocation5 + $0x18] sm:$0xf] %v2380
    %2421 = vst [vmem:[#allocation5 + $0x1c] sm:$0xf] %v2381
    %2422 = vst [vmem:[#allocation5 + $0x20] sm:$0xf] %v2382
    %2423 = vst [vmem:[#allocation5 + $0x24] sm:$0xf] %v2383
    %2424 = vst [vmem:[#allocation5 + $0x28] sm:$0xf] %v2384
    %2425 = vst [vmem:[#allocation5 + $0x2c] sm:$0xf] %v2385
    %2426 = vst [vmem:[#allocation5 + $0x30] sm:$0xf] %v2386
    %2427 = vst [vmem:[#allocation5 + $0x34] sm:$0xf] %v2387
    %2428 = vst [vmem:[#allocation5 + $0x38] sm:$0xf] %v2388
    %2429 = vst [vmem:[#allocation5 + $0x3c] sm:$0xf] %v2389
    %2430 = vst [vmem:[#allocation5 + $0x40] sm:$0xf] %v2390
    %2431 = vst [vmem:[#allocation5 + $0x44] sm:$0xf] %v2391
    %2432 = vst [vmem:[#allocation5 + $0x48] sm:$0xf] %v2392
    %2433 = vst [vmem:[#allocation5 + $0x4c] sm:$0xf] %v2393
    // Predicated region
    $region18: #{tpu_custom_call.1} parent=1 // pred_check
      _
    $region19: #{tpu_custom_call.1} parent=1 // pred_check_branch
      %2435 = sbr.rel (0) target = $region21
    $region20: #{tpu_custom_call.1} parent=1 // pred_region
      %s2437 = ssub.s32 1280, 1280
      %2438 = vsyncadd [#allocation4], %s2437
      %s2439 = sshll.u32 [#allocation5], 4
      %s2440 = int_to_ptr.vmem [resolvable:$true] %s2439
      %2445 = dma.vmem_to_hbm [thread:$0]  %s2440, 1280, %s3, [#allocation4], 64, 64, 4
    $region21: #{tpu_custom_call.1} parent=1 // pred_fallthru
      _
    // Predicated region
    $region22: #{tpu_custom_call.1} parent=1 // pred_check
      _
    $region23: #{tpu_custom_call.1} parent=1 // pred_check_branch
      %2447 = sbr.rel (0) target = $region25
    $region24: #{tpu_custom_call.1} parent=1 // pred_region
      %2448 = dma.done [#allocation4], 1280
    $region25: #{tpu_custom_call.1} parent=1 // pred_fallthru
      _
    %2449 = vsyncpa [#allocation3], 1
    %2450 = vsyncpa [#allocation4], 1

</llo_original>
